<compile_context>
chip_gen: v6e
topology: v6e:2x2x1
jax: 0.10.0
libtpu: 0.0.40
codegen_flags: <defaults>
</compile_context>

<pallas_src>
import math
import functools

import jax
import jax.numpy as jnp
from jax.experimental import pallas as pl
from jax.experimental.pallas import tpu as pltpu


def _vmem_limit_bytes():
    """~100 MiB on 128-MiB VMEM parts (v5e/v6e), 48 MiB on 64-MiB parts (v7x)."""
    try:
        cap = pltpu.get_tpu_info().vmem_capacity_bytes
    except Exception:
        cap = 64 * 1024 * 1024
    if cap >= 128 * 1024 * 1024:
        return 100 * 1024 * 1024
    return 48 * 1024 * 1024


def _pick_tile(total, candidates):
    for cand in candidates:
        if total % cand == 0 and total // cand >= 2:
            return cand
    return total


# --------------------------------------------------------------------------------------
# Kernel 0 ("prep"): GroupNorm statistics (tiled over HW) + context_kv linear.
# --------------------------------------------------------------------------------------
def _prep_kernel(x_ref, ctx_ref, gmat_ref, wck_ref, bck_ref, wcv_ref, bcv_ref,
                 mean_ref, istd_ref, ck_ref, cv_ref, acc_ref,
                 *, num_heads, head_dim, eps):
    j = pl.program_id(1)

    @pl.when(j == 0)
    def _():
        acc_ref[...] = jnp.zeros_like(acc_ref)

    x = x_ref[...]                                             # (C, THW) f32
    acc_ref[...] += jnp.concatenate(
        [jnp.sum(x, axis=1, keepdims=True),
         jnp.sum(x * x, axis=1, keepdims=True)], axis=1)       # (C, 2)

    @pl.when(j == pl.num_programs(1) - 1)
    def _():
        n, d = num_heads, head_dim
        # One (C,C)@(C,2) group-average matvec for [E[x], E[x^2]] (merged matvecs).
        stats = jax.lax.dot_general(
            gmat_ref[...], acc_ref[...], (((1,), (0,)), ((), ())),
            precision=jax.lax.Precision.HIGHEST,
            preferred_element_type=jnp.float32)                # (C, 2)
        mean = stats[:, 0:1]
        var = jnp.maximum(stats[:, 1:2] - mean * mean, 0.0)    # clamp one-pass variance
        mean_ref[...] = mean
        istd_ref[...] = jax.lax.rsqrt(var + eps)

        # context_kv linear, once per batch element (lane-padded context).
        ctx = ctx_ref[...]                                     # (Lp, Cctx) bf16
        ck = jax.lax.dot_general(wck_ref[...], ctx, (((1,), (1,)), ((), ())),
                                 preferred_element_type=jnp.float32) + bck_ref[...]
        cv = jax.lax.dot_general(wcv_ref[...], ctx, (((1,), (1,)), ((), ())),
                                 preferred_element_type=jnp.float32) + bcv_ref[...]
        lp = ck.shape[-1]
        ck_ref[...] = ck.astype(jnp.bfloat16).reshape(n, d, lp)
        cv_ref[...] = cv.astype(jnp.bfloat16).reshape(n, d, lp)


# --------------------------------------------------------------------------------------
# Kernel 1 ("qkv"): per-HW-tile normalization + split q/k/v projections.
# --------------------------------------------------------------------------------------
def _qkv_kernel(x_ref, mean_ref, istd_ref, gnw_ref, gnb_ref,
                wq_ref, bq_ref, wk_ref, bk_ref, wv_ref, bv_ref,
                q_ref, k_ref, v_ref, *, num_heads, head_dim):
    n, d = num_heads, head_dim
    thw = x_ref.shape[-1]

    x = x_ref[...]                                             # (C, THW) f32
    scale = istd_ref[...] * gnw_ref[...]                       # (C, 1)
    shift = gnb_ref[...] - mean_ref[...] * scale               # (C, 1)
    x_n = (x * scale + shift).astype(jnp.bfloat16)             # (C, THW) bf16

    # No (3C, HW) intermediate: three dots, bias fused, each written straight out.
    q = jnp.dot(wq_ref[...], x_n, preferred_element_type=jnp.float32) + bq_ref[...]
    # Transpose on the bf16 copy (half the XLU bytes), per head -> (n, THW, d).
    q_ref[...] = jnp.transpose(q.astype(jnp.bfloat16).reshape(n, d, thw), (0, 2, 1))

    k = jnp.dot(wk_ref[...], x_n, preferred_element_type=jnp.float32) + bk_ref[...]
    k_ref[...] = k.astype(jnp.bfloat16).reshape(n, d, thw)

    v = jnp.dot(wv_ref[...], x_n, preferred_element_type=jnp.float32) + bv_ref[...]
    v_ref[...] = v.astype(jnp.bfloat16).reshape(n, d, thw)


# --------------------------------------------------------------------------------------
# Kernel 2 ("attention"): per-head attention (fori_loop), proj, residual.
# --------------------------------------------------------------------------------------
def _attention_kernel(q_ref, k_ref, v_ref, ck_ref, cv_ref, xres_ref,
                      wp_ref, bp_ref, out_ref, acc_ref,
                      *, num_heads, head_dim, ctx_len):
    n, d = num_heads, head_dim
    lp = ck_ref.shape[-1]

    # Static mask bias for padded context columns (hoisted out of the head loop).
    if lp > ctx_len:
        ctx_bias = jnp.where(
            jax.lax.broadcasted_iota(jnp.int32, (1, lp), 1) < ctx_len,
            0.0, -1e30).astype(jnp.float32)
    else:
        ctx_bias = None

    def head_body(i, carry):
        q_i = q_ref[i]                                         # (TQ, d) bf16 (scale folded)
        k_i = k_ref[i]                                         # (d, HW) bf16
        v_i = v_ref[i]                                         # (d, HW) bf16
        ck_i = ck_ref[i]                                       # (d, Lp) bf16
        cv_i = cv_ref[i]                                       # (d, Lp) bf16

        s_self = jnp.dot(q_i, k_i, preferred_element_type=jnp.float32)   # (TQ, HW)
        s_ctx = jnp.dot(q_i, ck_i, preferred_element_type=jnp.float32)   # (TQ, Lp)
        if ctx_bias is not None:
            s_ctx = s_ctx + ctx_bias
        # TODO(synk): optional `mask` branch (masked_fill with -inf) not implemented.
        m = jnp.maximum(jnp.max(s_self, axis=-1, keepdims=True),
                        jnp.max(s_ctx, axis=-1, keepdims=True))           # (TQ, 1)
        p_self = jnp.exp(s_self - m)
        p_ctx = jnp.exp(s_ctx - m)
        inv = pl.reciprocal(jnp.sum(p_self, axis=-1, keepdims=True)
                            + jnp.sum(p_ctx, axis=-1, keepdims=True),
                            approx=True)                                   # (TQ, 1)
        p_self = (p_self * inv).astype(jnp.bfloat16)
        p_ctx = (p_ctx * inv).astype(jnp.bfloat16)

        # out_i (d, TQ) = v_i @ p_self^T + cv_i @ p_ctx^T  (trans-B dots)
        o = jax.lax.dot_general(v_i, p_self, (((1,), (1,)), ((), ())),
                                preferred_element_type=jnp.float32)
        o = o + jax.lax.dot_general(cv_i, p_ctx, (((1,), (1,)), ((), ())),
                                    preferred_element_type=jnp.float32)
        acc_ref[i] = o.astype(jnp.bfloat16)                    # leading-dim write, no concat
        return carry

    jax.lax.fori_loop(0, n, head_body, 0)

    # ---------------- proj (1x1 conv) + bias + residual ----------------
    c = n * d
    tq = acc_ref.shape[-1]
    attn = acc_ref[...].reshape(c, tq)                         # free sublane merge
    y = jnp.dot(wp_ref[...], attn, preferred_element_type=jnp.float32) + bp_ref[...]
    out_ref[...] = y + xres_ref[...]


# --------------------------------------------------------------------------------------
# Wrapper
# --------------------------------------------------------------------------------------
def attention_block(x_nchw, context, params, num_heads, head_dim):
    b, c, h, w = x_nchw.shape
    hw = h * w
    L, ctx_dim = context.shape[1], context.shape[2]
    n, d = num_heads, head_dim
    assert n * d == c and c % 32 == 0
    scale2 = float(head_dim) ** (-0.5)               # (d^-0.25)^2 folded into q

    vmem_limit = _vmem_limit_bytes()

    # NCHW -> (B, C, HW): reshape only, no transpose (and none on the way out).
    x = x_nchw.reshape(b, c, hw).astype(jnp.float32)

    # Pad context length to a lane multiple (>= 128); padded columns are masked in-kernel.
    lp = max(128, ((L + 127) // 128) * 128)
    ctx_p = jnp.pad(context.astype(jnp.bfloat16), ((0, 0), (0, lp - L), (0, 0)))

    # GroupNorm(32, C) group-averaging matrix: gm @ [sum, sumsq] = [E[x], E[x^2]].
    num_groups = 32
    cg = c // num_groups
    gid = jnp.arange(c) // cg
    gmat = (gid[:, None] == gid[None, :]).astype(jnp.float32) / float(cg * hw)

    gn_w = params["gn_w"].reshape(c, 1).astype(jnp.float32)
    gn_b = params["gn_b"].reshape(c, 1).astype(jnp.float32)

    # Split to_qkv and fold the softmax scale d^-0.5 into the q part.
    w_qkv = params["w_qkv"].astype(jnp.float32)
    b_qkv = params["b_qkv"].astype(jnp.float32)
    w_q = (w_qkv[:c] * scale2).astype(jnp.bfloat16)
    b_q = (b_qkv[:c] * scale2).reshape(c, 1)
    w_k = w_qkv[c:2 * c].astype(jnp.bfloat16)
    b_k = b_qkv[c:2 * c].reshape(c, 1)
    w_v = w_qkv[2 * c:].astype(jnp.bfloat16)
    b_v = b_qkv[2 * c:].reshape(c, 1)

    w_ckv = params["w_ckv"].astype(jnp.float32)
    b_ckv = params["b_ckv"].astype(jnp.float32)
    w_ck = w_ckv[:c].astype(jnp.bfloat16)
    b_ck = b_ckv[:c].reshape(c, 1)
    w_cv = w_ckv[c:].astype(jnp.bfloat16)
    b_cv = b_ckv[c:].reshape(c, 1)

    w_proj = params["w_proj"].astype(jnp.bfloat16)
    b_proj = params["b_proj"].reshape(c, 1).astype(jnp.float32)

    # ---------------- kernel 0: GroupNorm stats (HW-tiled) + context_kv ----------------
    thw = _pick_tile(hw, (2048, 1024, 512, 256, 128))
    nhw = hw // thw

    mean, istd, ck, cv = pl.pallas_call(
        functools.partial(_prep_kernel, num_heads=n, head_dim=d, eps=1e-5),
        out_shape=(
            jax.ShapeDtypeStruct((b, c, 1), jnp.float32),
            jax.ShapeDtypeStruct((b, c, 1), jnp.float32),
            jax.ShapeDtypeStruct((b, n, d, lp), jnp.bfloat16),
            jax.ShapeDtypeStruct((b, n, d, lp), jnp.bfloat16),
        ),
        grid_spec=pltpu.PrefetchScalarGridSpec(
            num_scalar_prefetch=0,
            grid=(b, nhw),
            in_specs=[
                pl.BlockSpec((None, c, thw), lambda i, j: (i, 0, j)),        # x tile
                pl.BlockSpec((None, lp, ctx_dim), lambda i, j: (i, 0, 0)),   # context
                pl.BlockSpec((c, c), lambda i, j: (0, 0)),                   # gmat
                pl.BlockSpec((c, ctx_dim), lambda i, j: (0, 0)),             # w_ck
                pl.BlockSpec((c, 1), lambda i, j: (0, 0)),                   # b_ck
                pl.BlockSpec((c, ctx_dim), lambda i, j: (0, 0)),             # w_cv
                pl.BlockSpec((c, 1), lambda i, j: (0, 0)),                   # b_cv
            ],
            out_specs=(
                pl.BlockSpec((None, c, 1), lambda i, j: (i, 0, 0)),
                pl.BlockSpec((None, c, 1), lambda i, j: (i, 0, 0)),
                pl.BlockSpec((None, n, d, lp), lambda i, j: (i, 0, 0, 0)),
                pl.BlockSpec((None, n, d, lp), lambda i, j: (i, 0, 0, 0)),
            ),
            scratch_shapes=[pltpu.VMEM((c, 2), jnp.float32)],
        ),
        compiler_params=pltpu.CompilerParams(
            dimension_semantics=("parallel", "arbitrary"),
            vmem_limit_bytes=vmem_limit),
    )(x, ctx_p, gmat, w_ck, b_ck, w_cv, b_cv)

    # ---------------- kernel 1: normalize + q/k/v projections (HW-tiled) ---------------
    q, k, v = pl.pallas_call(
        functools.partial(_qkv_kernel, num_heads=n, head_dim=d),
        out_shape=(
            jax.ShapeDtypeStruct((b, n, hw, d), jnp.bfloat16),
            jax.ShapeDtypeStruct((b, n, d, hw), jnp.bfloat16),
            jax.ShapeDtypeStruct((b, n, d, hw), jnp.bfloat16),
        ),
        grid_spec=pltpu.PrefetchScalarGridSpec(
            num_scalar_prefetch=0,
            grid=(b, nhw),
            in_specs=[
                pl.BlockSpec((None, c, thw), lambda i, j: (i, 0, j)),    # x tile
                pl.BlockSpec((None, c, 1), lambda i, j: (i, 0, 0)),      # mean
                pl.BlockSpec((None, c, 1), lambda i, j: (i, 0, 0)),      # inv_std
                pl.BlockSpec((c, 1), lambda i, j: (0, 0)),               # gn_w
                pl.BlockSpec((c, 1), lambda i, j: (0, 0)),               # gn_b
                pl.BlockSpec((c, c), lambda i, j: (0, 0)),               # w_q
                pl.BlockSpec((c, 1), lambda i, j: (0, 0)),               # b_q
                pl.BlockSpec((c, c), lambda i, j: (0, 0)),               # w_k
                pl.BlockSpec((c, 1), lambda i, j: (0, 0)),               # b_k
                pl.BlockSpec((c, c), lambda i, j: (0, 0)),               # w_v
                pl.BlockSpec((c, 1), lambda i, j: (0, 0)),               # b_v
            ],
            out_specs=(
                pl.BlockSpec((None, n, thw, d), lambda i, j: (i, 0, j, 0)),
                pl.BlockSpec((None, n, d, thw), lambda i, j: (i, 0, 0, j)),
                pl.BlockSpec((None, n, d, thw), lambda i, j: (i, 0, 0, j)),
            ),
        ),
        compiler_params=pltpu.CompilerParams(
            dimension_semantics=("parallel", "parallel"),
            vmem_limit_bytes=vmem_limit),
    )(x, mean, istd, gn_w, gn_b, w_q, b_q, w_k, b_k, w_v, b_v)

    # ---------------- kernel 2: attention + proj + residual, query-tiled ---------------
    # 128 kept only as a small-image / v5e fallback; real resolutions pick 512.
    tq = _pick_tile(hw, (512, 256, 128))
    nq = hw // tq

    def run_attention(single_buffer_kv):
        kv_kwargs = {"pipeline_mode": pl.Buffered(1)} if single_buffer_kv else {}
        return pl.pallas_call(
            functools.partial(_attention_kernel, num_heads=n, head_dim=d, ctx_len=L),
            out_shape=jax.ShapeDtypeStruct((b, c, hw), jnp.float32),
            grid_spec=pltpu.PrefetchScalarGridSpec(
                num_scalar_prefetch=0,
                grid=(b, nq),
                in_specs=[
                    pl.BlockSpec((None, n, tq, d), lambda i, j: (i, 0, j, 0)),            # q tile
                    pl.BlockSpec((None, n, d, hw), lambda i, j: (i, 0, 0, 0), **kv_kwargs),  # k
                    pl.BlockSpec((None, n, d, hw), lambda i, j: (i, 0, 0, 0), **kv_kwargs),  # v
                    pl.BlockSpec((None, n, d, lp), lambda i, j: (i, 0, 0, 0), **kv_kwargs),  # ck
                    pl.BlockSpec((None, n, d, lp), lambda i, j: (i, 0, 0, 0), **kv_kwargs),  # cv
                    pl.BlockSpec((None, c, tq), lambda i, j: (i, 0, j)),                  # residual
                    pl.BlockSpec((c, c), lambda i, j: (0, 0)),                            # w_proj
                    pl.BlockSpec((c, 1), lambda i, j: (0, 0)),                            # b_proj
                ],
                out_specs=pl.BlockSpec((None, c, tq), lambda i, j: (i, 0, j)),
                scratch_shapes=[pltpu.VMEM((n, d, tq), jnp.bfloat16)],
            ),
            compiler_params=pltpu.CompilerParams(
                dimension_semantics=("parallel", "parallel"),
                vmem_limit_bytes=vmem_limit),
        )(q, k, v, ck, cv, x, w_proj, b_proj)

    try:
        out = run_attention(True)
    except Exception:
        # pl.Buffered(1) single-buffering not supported on this jax build; fall back
        # to default double-buffering (correctness identical, slightly more VMEM).
        out = run_attention(False)

    # (B, C, HW) -> NCHW: reshape only.
    return out.reshape(b, c, h, w)


# --------------------------------------------------------------------------------------
# Pure-JAX reference of the PyTorch forward, for checking.
# --------------------------------------------------------------------------------------
def reference(x, context, params, num_heads, head_dim):
    b, c, h, w = x.shape
    n, d = num_heads, head_dim
    hw = h * w
    hp = jax.lax.Precision.HIGHEST

    G = 32
    xg = x.reshape(b, G, c // G, h, w)
    mean = xg.mean(axis=(2, 3, 4), keepdims=True)
    var = xg.var(axis=(2, 3, 4), keepdims=True)
    xn = (xg - mean) / jnp.sqrt(var + 1e-5)
    xn = xn.reshape(b, c, h, w) * params["gn_w"].reshape(1, c, 1, 1) \
        + params["gn_b"].reshape(1, c, 1, 1)

    qkv = jnp.einsum('bchw,oc->bohw', xn, params["w_qkv"], precision=hp) \
        + params["b_qkv"].reshape(1, -1, 1, 1)
    qkv = qkv.reshape(b, 3 * n, d, hw)
    q, k, v = qkv[:, :n], qkv[:, n:2 * n], qkv[:, 2 * n:]

    ckv = jnp.einsum('blc,oc->blo', context, params["w_ckv"], precision=hp) + params["b_ckv"]
    ckv = ckv.reshape(b, -1, 2 * n, d).transpose(0, 2, 3, 1)          # (b, 2n, d, L)
    ck, cv = ckv[:, :n], ckv[:, n:]
    k = jnp.concatenate([ck, k], axis=-1)
    v = jnp.concatenate([cv, v], axis=-1)

    scale = math.pow(d, -0.25)
    attn = jnp.einsum('bndq,bndk->bnqk', q * scale, k * scale, precision=hp)
    attn = jax.nn.softmax(attn, axis=-1)
    out = jnp.einsum('bndk,bnqk->bndq', v, attn, precision=hp)         # (b, n, d, hw)
    out = out.reshape(b, c, h, w)
    out = jnp.einsum('bchw,oc->bohw', out, params["w_proj"], precision=hp) \
        + params["b_proj"].reshape(1, -1, 1, 1)
    return out + x


if __name__ == "__main__":
    B, DIM, H, W = 2, 64, 16, 16          # HW = 256 -> exercises hw tiling and query tiling
    NUM_HEADS = 2
    HEAD_DIM = DIM // NUM_HEADS
    CTX_DIM, CTX_LEN = 32, 8

    key = jax.random.PRNGKey(0)
    keys = jax.random.split(key, 8)
    x = jax.random.normal(keys[0], (B, DIM, H, W), jnp.float32)
    context = jax.random.normal(keys[1], (B, CTX_LEN, CTX_DIM), jnp.float32)

    params = {
        # PyTorch GroupNorm default affine init
        "gn_w": jnp.ones((DIM,), jnp.float32),
        "gn_b": jnp.zeros((DIM,), jnp.float32),
        # to_qkv: Conv2d(dim, 3*dim, 1) -> weight (3*dim, dim)
        "w_qkv": 0.05 * jax.random.normal(keys[2], (3 * DIM, DIM), jnp.float32),
        "b_qkv": 0.05 * jax.random.normal(keys[3], (3 * DIM,), jnp.float32),
        # context_kv: Linear(context_dim, 2*dim) -> weight (2*dim, context_dim)
        "w_ckv": 0.05 * jax.random.normal(keys[4], (2 * DIM, CTX_DIM), jnp.float32),
        "b_ckv": 0.05 * jax.random.normal(keys[5], (2 * DIM,), jnp.float32),
        # proj: Conv2d(dim, dim, 1). NOTE: the original module zero-inits proj.weight;
        # we use a deterministic random init so the attention path affects the output.
        "w_proj": 0.05 * jax.random.normal(keys[6], (DIM, DIM), jnp.float32),
        "b_proj": 0.05 * jax.random.normal(keys[7], (DIM,), jnp.float32),
    }

    out = attention_block(x, context, params, NUM_HEADS, HEAD_DIM)
    out = jax.block_until_ready(out)

    ref = reference(x, context, params, NUM_HEADS, HEAD_DIM)
    assert out.shape == x.shape and out.dtype == x.dtype
    max_err = float(jnp.max(jnp.abs(out - ref)))
    assert jnp.allclose(out, ref, atol=3e-2, rtol=3e-2), f"max_err={max_err}"
    print("KERNEL_OK")
</pallas_src>

<mosaic_0001>
module attributes {stable_mosaic.version = 11 : i64} {
  func.func @_prep_kernel(%arg0: i32, %arg1: i32, %arg2: memref<1x64x128xf32, #tpu.memory_space<vmem>>, %arg3: memref<1x128x32xbf16, #tpu.memory_space<vmem>>, %arg4: memref<64x64xf32, #tpu.memory_space<vmem>>, %arg5: memref<64x32xbf16, #tpu.memory_space<vmem>>, %arg6: memref<64x1xf32, #tpu.memory_space<vmem>>, %arg7: memref<64x32xbf16, #tpu.memory_space<vmem>>, %arg8: memref<64x1xf32, #tpu.memory_space<vmem>>, %arg9: memref<1x64x1xf32, #tpu.memory_space<vmem>>, %arg10: memref<1x64x1xf32, #tpu.memory_space<vmem>>, %arg11: memref<1x2x32x128xbf16, #tpu.memory_space<vmem>>, %arg12: memref<1x2x32x128xbf16, #tpu.memory_space<vmem>>, %arg13: memref<64x2xf32, #tpu.memory_space<vmem>>) attributes {dimension_semantics = [#tpu.dimension_semantics<parallel>, #tpu.dimension_semantics<arbitrary>], iteration_bounds = array<i64: 2, 2>, scalar_prefetch = 0 : i64, scratch_operands = 1 : i64, tpu.core_type = #tpu.core_type<tc>, window_params = [{transform_indices = @transform_0, window_bounds = array<i64: 1, 64, 128>}, {transform_indices = @transform_1, window_bounds = array<i64: 1, 128, 32>}, {pipeline_mode = #tpu.pipeline_mode<synchronous>, transform_indices = @transform_2, window_bounds = array<i64: 64, 64>}, {pipeline_mode = #tpu.pipeline_mode<synchronous>, transform_indices = @transform_3, window_bounds = array<i64: 64, 32>}, {pipeline_mode = #tpu.pipeline_mode<synchronous>, transform_indices = @transform_4, window_bounds = array<i64: 64, 1>}, {pipeline_mode = #tpu.pipeline_mode<synchronous>, transform_indices = @transform_5, window_bounds = array<i64: 64, 32>}, {pipeline_mode = #tpu.pipeline_mode<synchronous>, transform_indices = @transform_6, window_bounds = array<i64: 64, 1>}, {transform_indices = @transform_7, window_bounds = array<i64: 1, 64, 1>}, {transform_indices = @transform_8, window_bounds = array<i64: 1, 64, 1>}, {transform_indices = @transform_9, window_bounds = array<i64: 1, 2, 32, 128>}, {transform_indices = @transform_10, window_bounds = array<i64: 1, 2, 32, 128>}]} {
    %c0_i32 = arith.constant 0 : i32
    %0 = arith.cmpi eq, %arg1, %c0_i32 : i32
    %1 = arith.extui %0 : i1 to i32
    %c0_i32_0 = arith.constant 0 : i32
    %2 = arith.cmpi ne, %1, %c0_i32_0 : i32
    scf.if %2 {
      %cst_9 = arith.constant 0.000000e+00 : f32
      %17 = vector.broadcast %cst_9 : f32 to vector<64x2xf32>
      %c0_10 = arith.constant 0 : index
      %c0_11 = arith.constant 0 : index
      %18 = vector.load %arg13[%c0_10, %c0_11] : memref<64x2xf32, #tpu.memory_space<vmem>>, vector<64x2xf32>
      tpu.vector_store %arg13[%c0_10, %c0_11], %17 {strides = array<i32>} : memref<64x2xf32, #tpu.memory_space<vmem>>, vector<64x2xf32>,
    } else {
    }
    %c0 = arith.constant 0 : index
    %c0_1 = arith.constant 0 : index
    %c0_2 = arith.constant 0 : index
    %3 = vector.load %arg2[%c0, %c0_1, %c0_2] : memref<1x64x128xf32, #tpu.memory_space<vmem>>, vector<1x64x128xf32>
    %4 = vector.shape_cast %3 : vector<1x64x128xf32> to vector<64x128xf32>
    %c0_3 = arith.constant 0 : index
    %c0_4 = arith.constant 0 : index
    %5 = vector.load %arg13[%c0_3, %c0_4] : memref<64x2xf32, #tpu.memory_space<vmem>>, vector<64x2xf32>
    %cst = arith.constant dense<0.000000e+00> : vector<64xf32>
    %6 = vector.multi_reduction <add>, %4, %cst [1] : vector<64x128xf32> to vector<64xf32>
    %7 = vector.shape_cast %6 : vector<64xf32> to vector<64x1xf32>
    %8 = arith.mulf %4, %4 : vector<64x128xf32>
    %cst_5 = arith.constant dense<0.000000e+00> : vector<64xf32>
    %9 = vector.multi_reduction <add>, %8, %cst_5 [1] : vector<64x128xf32> to vector<64xf32>
    %10 = vector.shape_cast %9 : vector<64xf32> to vector<64x1xf32>
    %11 = tpu.concatenate %7, %10 in 1 : vector<64x1xf32>, vector<64x1xf32> -> vector<64x2xf32>
    %12 = arith.addf %5, %11 : vector<64x2xf32>
    %c0_6 = arith.constant 0 : index
    %c0_7 = arith.constant 0 : index
    %13 = vector.load %arg13[%c0_6, %c0_7] : memref<64x2xf32, #tpu.memory_space<vmem>>, vector<64x2xf32>
    tpu.vector_store %arg13[%c0_6, %c0_7], %12 {strides = array<i32>} : memref<64x2xf32, #tpu.memory_space<vmem>>, vector<64x2xf32>,
    %c1_i32 = arith.constant 1 : i32
    %14 = arith.cmpi eq, %arg1, %c1_i32 : i32
    %15 = arith.extui %14 : i1 to i32
    %c0_i32_8 = arith.constant 0 : i32
    %16 = arith.cmpi ne, %15, %c0_i32_8 : i32
    scf.if %16 {
      %c0_9 = arith.constant 0 : index
      %c0_10 = arith.constant 0 : index
      %17 = vector.load %arg4[%c0_9, %c0_10] : memref<64x64xf32, #tpu.memory_space<vmem>>, vector<64x64xf32>
      %c0_11 = arith.constant 0 : index
      %c0_12 = arith.constant 0 : index
      %18 = vector.load %arg13[%c0_11, %c0_12] : memref<64x2xf32, #tpu.memory_space<vmem>>, vector<64x2xf32>
      %cst_13 = arith.constant dense<0.000000e+00> : vector<64x2xf32>
      %19 = tpu.matmul %17, %18, %cst_13 {dimension_numbers = #tpu.dot_dimension_numbers<[1], [0], [0], [1], [0, 0, 1, 1], [], []>, precision = #tpu.contract_precision<fp32>} : vector<64x64xf32>, vector<64x2xf32>, vector<64x2xf32> -> vector<64x2xf32>
      %20 = vector.extract_strided_slice %19 {offsets = [0, 0], sizes = [64, 1], strides = [1, 1]} : vector<64x2xf32> to vector<64x1xf32>
      %21 = vector.extract_strided_slice %19 {offsets = [0, 1], sizes = [64, 1], strides = [1, 1]} : vector<64x2xf32> to vector<64x1xf32>
      %22 = arith.mulf %20, %20 : vector<64x1xf32>
      %23 = arith.subf %21, %22 : vector<64x1xf32>
      %cst_14 = arith.constant 0.000000e+00 : f32
      %24 = vector.broadcast %cst_14 : f32 to vector<64x1xf32>
      %25 = arith.maximumf %23, %24 : vector<64x1xf32>
      %c0_15 = arith.constant 0 : index
      %c0_16 = arith.constant 0 : index
      %c0_17 = arith.constant 0 : index
      %26 = vector.load %arg9[%c0_15, %c0_16, %c0_17] : memref<1x64x1xf32, #tpu.memory_space<vmem>>, vector<1x64x1xf32>
      %27 = vector.shape_cast %26 : vector<1x64x1xf32> to vector<64x1xf32>
      %28 = vector.shape_cast %20 : vector<64x1xf32> to vector<1x64x1xf32>
      tpu.vector_store %arg9[%c0_15, %c0_16, %c0_17], %28 {strides = array<i32>} : memref<1x64x1xf32, #tpu.memory_space<vmem>>, vector<1x64x1xf32>,
      %cst_18 = arith.constant 9.99999974E-6 : f32
      %29 = vector.broadcast %cst_18 : f32 to vector<64x1xf32>
      %30 = arith.addf %25, %29 : vector<64x1xf32>
      %31 = math.rsqrt %30 : vector<64x1xf32>
      %c0_19 = arith.constant 0 : index
      %c0_20 = arith.constant 0 : index
      %c0_21 = arith.constant 0 : index
      %32 = vector.load %arg10[%c0_19, %c0_20, %c0_21] : memref<1x64x1xf32, #tpu.memory_space<vmem>>, vector<1x64x1xf32>
      %33 = vector.shape_cast %32 : vector<1x64x1xf32> to vector<64x1xf32>
      %34 = vector.shape_cast %31 : vector<64x1xf32> to vector<1x64x1xf32>
      tpu.vector_store %arg10[%c0_19, %c0_20, %c0_21], %34 {strides = array<i32>} : memref<1x64x1xf32, #tpu.memory_space<vmem>>, vector<1x64x1xf32>,
      %c0_22 = arith.constant 0 : index
      %c0_23 = arith.constant 0 : index
      %c0_24 = arith.constant 0 : index
      %35 = vector.load %arg3[%c0_22, %c0_23, %c0_24] : memref<1x128x32xbf16, #tpu.memory_space<vmem>>, vector<1x128x32xbf16>
      %36 = vector.shape_cast %35 : vector<1x128x32xbf16> to vector<128x32xbf16>
      %c0_25 = arith.constant 0 : index
      %c0_26 = arith.constant 0 : index
      %37 = vector.load %arg5[%c0_25, %c0_26] : memref<64x32xbf16, #tpu.memory_space<vmem>>, vector<64x32xbf16>
      %cst_27 = arith.constant dense<0.000000e+00> : vector<64x128xf32>
      %38 = tpu.matmul %37, %36, %cst_27 {dimension_numbers = #tpu.dot_dimension_numbers<[1], [1], [0], [0], [0, 0, 1, 0], [], []>} : vector<64x32xbf16>, vector<128x32xbf16>, vector<64x128xf32> -> vector<64x128xf32>
      %c0_28 = arith.constant 0 : index
      %c0_29 = arith.constant 0 : index
      %39 = vector.load %arg6[%c0_28, %c0_29] : memref<64x1xf32, #tpu.memory_space<vmem>>, vector<64x1xf32>
      %40 = vector.broadcast %39 : vector<64x1xf32> to vector<64x128xf32>
      %41 = arith.addf %38, %40 : vector<64x128xf32>
      %c0_30 = arith.constant 0 : index
      %c0_31 = arith.constant 0 : index
      %42 = vector.load %arg7[%c0_30, %c0_31] : memref<64x32xbf16, #tpu.memory_space<vmem>>, vector<64x32xbf16>
      %cst_32 = arith.constant dense<0.000000e+00> : vector<64x128xf32>
      %43 = tpu.matmul %42, %36, %cst_32 {dimension_numbers = #tpu.dot_dimension_numbers<[1], [1], [0], [0], [0, 0, 1, 0], [], []>} : vector<64x32xbf16>, vector<128x32xbf16>, vector<64x128xf32> -> vector<64x128xf32>
      %c0_33 = arith.constant 0 : index
      %c0_34 = arith.constant 0 : index
      %44 = vector.load %arg8[%c0_33, %c0_34] : memref<64x1xf32, #tpu.memory_space<vmem>>, vector<64x1xf32>
      %45 = vector.broadcast %44 : vector<64x1xf32> to vector<64x128xf32>
      %46 = arith.addf %43, %45 : vector<64x128xf32>
      %47 = arith.truncf %41 : vector<64x128xf32> to vector<64x128xbf16>
      %48 = vector.shape_cast %47 : vector<64x128xbf16> to vector<2x32x128xbf16>
      %c0_35 = arith.constant 0 : index
      %c0_36 = arith.constant 0 : index
      %c0_37 = arith.constant 0 : index
      %c0_38 = arith.constant 0 : index
      %49 = vector.load %arg11[%c0_35, %c0_36, %c0_37, %c0_38] : memref<1x2x32x128xbf16, #tpu.memory_space<vmem>>, vector<1x2x32x128xbf16>
      %50 = vector.shape_cast %49 : vector<1x2x32x128xbf16> to vector<2x32x128xbf16>
      %51 = vector.shape_cast %48 : vector<2x32x128xbf16> to vector<1x2x32x128xbf16>
      tpu.vector_store %arg11[%c0_35, %c0_36, %c0_37, %c0_38], %51 {strides = array<i32>} : memref<1x2x32x128xbf16, #tpu.memory_space<vmem>>, vector<1x2x32x128xbf16>,
      %52 = arith.truncf %46 : vector<64x128xf32> to vector<64x128xbf16>
      %53 = vector.shape_cast %52 : vector<64x128xbf16> to vector<2x32x128xbf16>
      %c0_39 = arith.constant 0 : index
      %c0_40 = arith.constant 0 : index
      %c0_41 = arith.constant 0 : index
      %c0_42 = arith.constant 0 : index
      %54 = vector.load %arg12[%c0_39, %c0_40, %c0_41, %c0_42] : memref<1x2x32x128xbf16, #tpu.memory_space<vmem>>, vector<1x2x32x128xbf16>
      %55 = vector.shape_cast %54 : vector<1x2x32x128xbf16> to vector<2x32x128xbf16>
      %56 = vector.shape_cast %53 : vector<2x32x128xbf16> to vector<1x2x32x128xbf16>
      tpu.vector_store %arg12[%c0_39, %c0_40, %c0_41, %c0_42], %56 {strides = array<i32>} : memref<1x2x32x128xbf16, #tpu.memory_space<vmem>>, vector<1x2x32x128xbf16>,
    } else {
    }
    return
  }
  func.func @transform_0(%arg0: i32, %arg1: i32) -> (i32, i32, i32) {
    %c0_i32 = arith.constant 0 : i32
    %c0_i32_0 = arith.constant 0 : i32
    return %arg0, %c0_i32, %arg1 : i32, i32, i32
  }
  func.func @transform_1(%arg0: i32, %arg1: i32) -> (i32, i32, i32) {
    %c0_i32 = arith.constant 0 : i32
    %c0_i32_0 = arith.constant 0 : i32
    %c0_i32_1 = arith.constant 0 : i32
    return %arg0, %c0_i32, %c0_i32_0 : i32, i32, i32
  }
  func.func @transform_2(%arg0: i32, %arg1: i32) -> (i32, i32) {
    %c0_i32 = arith.constant 0 : i32
    %c0_i32_0 = arith.constant 0 : i32
    %c0_i32_1 = arith.constant 0 : i32
    return %c0_i32, %c0_i32_0 : i32, i32
  }
  func.func @transform_3(%arg0: i32, %arg1: i32) -> (i32, i32) {
    %c0_i32 = arith.constant 0 : i32
    %c0_i32_0 = arith.constant 0 : i32
    %c0_i32_1 = arith.constant 0 : i32
    return %c0_i32, %c0_i32_0 : i32, i32
  }
  func.func @transform_4(%arg0: i32, %arg1: i32) -> (i32, i32) {
    %c0_i32 = arith.constant 0 : i32
    %c0_i32_0 = arith.constant 0 : i32
    %c0_i32_1 = arith.constant 0 : i32
    return %c0_i32, %c0_i32_0 : i32, i32
  }
  func.func @transform_5(%arg0: i32, %arg1: i32) -> (i32, i32) {
    %c0_i32 = arith.constant 0 : i32
    %c0_i32_0 = arith.constant 0 : i32
    %c0_i32_1 = arith.constant 0 : i32
    return %c0_i32, %c0_i32_0 : i32, i32
  }
  func.func @transform_6(%arg0: i32, %arg1: i32) -> (i32, i32) {
    %c0_i32 = arith.constant 0 : i32
    %c0_i32_0 = arith.constant 0 : i32
    %c0_i32_1 = arith.constant 0 : i32
    return %c0_i32, %c0_i32_0 : i32, i32
  }
  func.func @transform_7(%arg0: i32, %arg1: i32) -> (i32, i32, i32) {
    %c0_i32 = arith.constant 0 : i32
    %c0_i32_0 = arith.constant 0 : i32
    %c0_i32_1 = arith.constant 0 : i32
    return %arg0, %c0_i32, %c0_i32_0 : i32, i32, i32
  }
  func.func @transform_8(%arg0: i32, %arg1: i32) -> (i32, i32, i32) {
    %c0_i32 = arith.constant 0 : i32
    %c0_i32_0 = arith.constant 0 : i32
    %c0_i32_1 = arith.constant 0 : i32
    return %arg0, %c0_i32, %c0_i32_0 : i32, i32, i32
  }
  func.func @transform_9(%arg0: i32, %arg1: i32) -> (i32, i32, i32, i32) {
    %c0_i32 = arith.constant 0 : i32
    %c0_i32_0 = arith.constant 0 : i32
    %c0_i32_1 = arith.constant 0 : i32
    %c0_i32_2 = arith.constant 0 : i32
    return %arg0, %c0_i32, %c0_i32_0, %c0_i32_1 : i32, i32, i32, i32
  }
  func.func @transform_10(%arg0: i32, %arg1: i32) -> (i32, i32, i32, i32) {
    %c0_i32 = arith.constant 0 : i32
    %c0_i32_0 = arith.constant 0 : i32
    %c0_i32_1 = arith.constant 0 : i32
    %c0_i32_2 = arith.constant 0 : i32
    return %arg0, %c0_i32, %c0_i32_0, %c0_i32_1 : i32, i32, i32, i32
  }
}

</mosaic_0001>

<llo_original>
// kernel: tpu_custom_call.1
$region0: #{tpu_custom_call.1}
  #allocation0 [shape = 'u32[]', space=smem, size = 0x4, offset = 0x4, fixed_abs, tag = 'smem constant byte address 0x4 - core index']
  #allocation1 [shape = 'u32[144,128]{1,0:T(1,128)}', space=vmem, size = 0x12000, scoped, tag = 'internal scratch']
  #allocation2 [shape = 'f32[64,2]{1,0:T(8,128)}', space=vmem, size = 0x8000, scoped, tag = 'scratch operand']
  %s0 = inlined_call_operand.vmem [shape: f32[2,64,256], index: 0, kind: input, shape index: {}]
  %s1 = inlined_call_operand.vmem [shape: bf16[2,128,32], index: 1, kind: input, shape index: {}]
  %s2 = inlined_call_operand.vmem [shape: f32[64,64], index: 2, kind: input, shape index: {}]
  %s3 = inlined_call_operand.vmem [shape: bf16[64,32], index: 3, kind: input, shape index: {}]
  %s4 = inlined_call_operand.vmem [shape: f32[64,1], index: 4, kind: input, shape index: {}]
  %s5 = inlined_call_operand.vmem [shape: bf16[64,32], index: 5, kind: input, shape index: {}]
  %s6 = inlined_call_operand.vmem [shape: f32[64,1], index: 6, kind: input, shape index: {}]
  %s7 = inlined_call_operand.vmem [shape: f32[2,64,1], index: 7, kind: output, shape index: {0}]
  %s8 = inlined_call_operand.vmem [shape: f32[2,64,1], index: 8, kind: output, shape index: {1}]
  %s9 = inlined_call_operand.hbm [shape: bf16[2,2,32,128], index: 9, kind: output, shape index: {2}]
  %s10 = inlined_call_operand.hbm [shape: bf16[2,2,32,128], index: 10, kind: output, shape index: {3}]
  %11 = xla_tuple %s7, %s8, %s9, %s10
  %s12 = sld [smem:[#allocation0]]
  $region131: #{tpu_custom_call.1} parent=0
    _
  %s14 = ssub.s32 1, %s12
  %s15 = scalar_select 0, %s14, %s12
  $region1: #{tpu_custom_call.1} parent=0
    #allocation3 [shape = 'u8[65536]{0}', space=vmem, size = 0x10000, scoped, tag = 'input window, operand 0']
    #allocation4 [shape = 'u8[32768]{0}', space=vmem, size = 0x8000, scoped, tag = 'output window, operand 2']
    #allocation5 [shape = 's32[2]{0}', space=sflag, size = 0x8, scoped, tag = 'scoped memory for tpu_custom_call.1']
    #allocation6 [shape = 'u8[32768]{0}', space=vmem, size = 0x8000, scoped, tag = 'output window, operand 3']
    #allocation7 [shape = 's32[2]{0}', space=sflag, size = 0x8, scoped, tag = 'scoped memory for tpu_custom_call.1']
    %16 = vsyncpa [#allocation5], 0
    %s17 = scalar_lea.sflag [#allocation5], 1
    %18 = vsyncpa %s17, 0
    %19 = vsyncpa [#allocation7], 0
    %s20 = scalar_lea.sflag [#allocation7], 1
    %21 = vsyncpa %s20, 0
    loop: start=0, step=1, limit=6
    $region2: #{tpu_custom_call.1} parent=1 // loop_pre_header
      _
    $region3: #{tpu_custom_call.1} parent=1 // loop_header
      %s23 = sphi 0, %s27
      %p24 = scmp.ge.s32.totalorder %s23, 6
      %s30 = sphi 0, %s42
      %s31 = sphi 0, %s38
      %s32 = sphi 0, %s30
      %s33 = sphi 0, %s31
      %s34 = sphi 0, %s32
      %s35 = sphi 0, %s33
      %s47 = sphi 0, %s49
      %s50 = sphi 0, %s47
      %s51 = sphi 0, %s50
      %s67 = sphi 0, %s51
      %s73 = sphi 0, %s75
      %s76 = sphi 0, %s73
      %s77 = sphi 0, %s76
      %s93 = sphi 0, %s77
      %s97 = sphi 0, %s97
      %s99 = sphi 0, %s97
      %s100 = sphi 0, %s99
      %s114 = sphi 0, %s100
      %s118 = sphi 0, %s118
      %s120 = sphi 0, %s118
      %s121 = sphi 0, %s120
      %s135 = sphi 0, %s121
      %s139 = sphi 0, %s139
      %s141 = sphi 0, %s139
      %s142 = sphi 0, %s141
      %s156 = sphi 0, %s142
      %s160 = sphi 0, %s160
      %s162 = sphi 0, %s160
      %s163 = sphi 0, %s162
      %s177 = sphi 0, %s163
      %s181 = sphi 0, %s181
      %s183 = sphi 0, %s181
      %s184 = sphi 0, %s183
      %s198 = sphi 0, %s184
      %s204 = sphi 0, %s206
      %s207 = sphi 0, %s204
      %s208 = sphi 0, %s207
      %s224 = sphi 0, %s208
      %s230 = sphi 0, %s232
      %s233 = sphi 0, %s230
      %s234 = sphi 0, %s233
      %s250 = sphi 0, %s234
      %s256 = sphi 0, %s258
      %s259 = sphi 0, %s256
      %s260 = sphi 0, %s259
      %s276 = sphi 0, %s260
      %s282 = sphi 0, %s284
      %s285 = sphi 0, %s282
      %s286 = sphi 0, %s285
      %s302 = sphi 0, %s286
    $region4: #{tpu_custom_call.1} parent=1 // loop_header_branch
      %26 = sbr.rel (%p24) target = $region8
    $region5: #{tpu_custom_call.1} parent=1 // loop_body
      %s28 = ssub.s32 %s23, 1
      %s29 = ssub.s32 %s23, 2
      %s36 = sadd.s32 1, %s31
      %p37 = scmp.ge.s32.totalorder %s36, 2
      %s38 = scalar_select %p37, 0, %s36
      %s39 = sadd.s32 1, %s30
      %s40 = scalar_select %p37, %s39, %s30
      %p41 = scmp.ge.s32.totalorder %s40, 2
      %s42 = scalar_select %p41, 0, %s40
      %s43 = ssub.s32 %s30, %s42
      %s44 = ssub.s32 %s31, %s38
      %s45 = sor.u32 %s43, %s44
      %p46 = scmp.eq.s32.totalorder %s45, 0
      %s48 = sadd.s32 %s47, 1
      %s49 = scalar_select %p46, %s47, %s48
      %p52 = pneg %p46
      %p53 = scmp.eq.s32.totalorder %s23, 3
      %p54 = por %p52, %p53
      %p55 = scmp.ne.s32.totalorder %s47, %s50
      %p56 = scmp.eq.s32.totalorder %s23, 0
      %p57 = por %p55, %p56
      %p58 = scmp.ne.s32.totalorder %s47, %s50
      %p59 = scmp.eq.s32.totalorder %s28, 3
      %p60 = por %p58, %p59
      %p61 = scmp.ne.s32.totalorder %s50, %s51
      %p62 = scmp.eq.s32.totalorder %s28, 0
      %p63 = por %p61, %p62
      %p64 = scmp.ne.s32.totalorder %s50, %s51
      %p65 = scmp.eq.s32.totalorder %s29, 3
      %p66 = por %p64, %p65
      %p68 = scmp.ne.s32.totalorder %s51, %s67
      %p69 = scmp.eq.s32.totalorder %s29, 0
      %p70 = por %p68, %p69
      %s71 = ssub.s32 %s30, %s42
      %p72 = scmp.eq.s32.totalorder %s71, 0
      %s74 = sadd.s32 %s73, 1
      %s75 = scalar_select %p72, %s73, %s74
      %p78 = pneg %p72
      %p79 = scmp.eq.s32.totalorder %s23, 3
      %p80 = por %p78, %p79
      %p81 = scmp.ne.s32.totalorder %s73, %s76
      %p82 = scmp.eq.s32.totalorder %s23, 0
      %p83 = por %p81, %p82
      %p84 = scmp.ne.s32.totalorder %s73, %s76
      %p85 = scmp.eq.s32.totalorder %s28, 3
      %p86 = por %p84, %p85
      %p87 = scmp.ne.s32.totalorder %s76, %s77
      %p88 = scmp.eq.s32.totalorder %s28, 0
      %p89 = por %p87, %p88
      %p90 = scmp.ne.s32.totalorder %s76, %s77
      %p91 = scmp.eq.s32.totalorder %s29, 3
      %p92 = por %p90, %p91
      %p94 = scmp.ne.s32.totalorder %s77, %s93
      %p95 = scmp.eq.s32.totalorder %s29, 0
      %p96 = por %p94, %p95
      %s98 = sadd.s32 %s97, 1
      %p101 = scmp.eq.s32.totalorder %s23, 3
      %p102 = scmp.ne.s32.totalorder %s97, %s99
      %p103 = scmp.eq.s32.totalorder %s23, 0
      %p104 = por %p102, %p103
      %p105 = scmp.ne.s32.totalorder %s97, %s99
      %p106 = scmp.eq.s32.totalorder %s28, 3
      %p107 = por %p105, %p106
      %p108 = scmp.ne.s32.totalorder %s99, %s100
      %p109 = scmp.eq.s32.totalorder %s28, 0
      %p110 = por %p108, %p109
      %p111 = scmp.ne.s32.totalorder %s99, %s100
      %p112 = scmp.eq.s32.totalorder %s29, 3
      %p113 = por %p111, %p112
      %p115 = scmp.ne.s32.totalorder %s100, %s114
      %p116 = scmp.eq.s32.totalorder %s29, 0
      %p117 = por %p115, %p116
      %s119 = sadd.s32 %s118, 1
      %p122 = scmp.eq.s32.totalorder %s23, 3
      %p123 = scmp.ne.s32.totalorder %s118, %s120
      %p124 = scmp.eq.s32.totalorder %s23, 0
      %p125 = por %p123, %p124
      %p126 = scmp.ne.s32.totalorder %s118, %s120
      %p127 = scmp.eq.s32.totalorder %s28, 3
      %p128 = por %p126, %p127
      %p129 = scmp.ne.s32.totalorder %s120, %s121
      %p130 = scmp.eq.s32.totalorder %s28, 0
      %p131 = por %p129, %p130
      %p132 = scmp.ne.s32.totalorder %s120, %s121
      %p133 = scmp.eq.s32.totalorder %s29, 3
      %p134 = por %p132, %p133
      %p136 = scmp.ne.s32.totalorder %s121, %s135
      %p137 = scmp.eq.s32.totalorder %s29, 0
      %p138 = por %p136, %p137
      %s140 = sadd.s32 %s139, 1
      %p143 = scmp.eq.s32.totalorder %s23, 3
      %p144 = scmp.ne.s32.totalorder %s139, %s141
      %p145 = scmp.eq.s32.totalorder %s23, 0
      %p146 = por %p144, %p145
      %p147 = scmp.ne.s32.totalorder %s139, %s141
      %p148 = scmp.eq.s32.totalorder %s28, 3
      %p149 = por %p147, %p148
      %p150 = scmp.ne.s32.totalorder %s141, %s142
      %p151 = scmp.eq.s32.totalorder %s28, 0
      %p152 = por %p150, %p151
      %p153 = scmp.ne.s32.totalorder %s141, %s142
      %p154 = scmp.eq.s32.totalorder %s29, 3
      %p155 = por %p153, %p154
      %p157 = scmp.ne.s32.totalorder %s142, %s156
      %p158 = scmp.eq.s32.totalorder %s29, 0
      %p159 = por %p157, %p158
      %s161 = sadd.s32 %s160, 1
      %p164 = scmp.eq.s32.totalorder %s23, 3
      %p165 = scmp.ne.s32.totalorder %s160, %s162
      %p166 = scmp.eq.s32.totalorder %s23, 0
      %p167 = por %p165, %p166
      %p168 = scmp.ne.s32.totalorder %s160, %s162
      %p169 = scmp.eq.s32.totalorder %s28, 3
      %p170 = por %p168, %p169
      %p171 = scmp.ne.s32.totalorder %s162, %s163
      %p172 = scmp.eq.s32.totalorder %s28, 0
      %p173 = por %p171, %p172
      %p174 = scmp.ne.s32.totalorder %s162, %s163
      %p175 = scmp.eq.s32.totalorder %s29, 3
      %p176 = por %p174, %p175
      %p178 = scmp.ne.s32.totalorder %s163, %s177
      %p179 = scmp.eq.s32.totalorder %s29, 0
      %p180 = por %p178, %p179
      %s182 = sadd.s32 %s181, 1
      %p185 = scmp.eq.s32.totalorder %s23, 3
      %p186 = scmp.ne.s32.totalorder %s181, %s183
      %p187 = scmp.eq.s32.totalorder %s23, 0
      %p188 = por %p186, %p187
      %p189 = scmp.ne.s32.totalorder %s181, %s183
      %p190 = scmp.eq.s32.totalorder %s28, 3
      %p191 = por %p189, %p190
      %p192 = scmp.ne.s32.totalorder %s183, %s184
      %p193 = scmp.eq.s32.totalorder %s28, 0
      %p194 = por %p192, %p193
      %p195 = scmp.ne.s32.totalorder %s183, %s184
      %p196 = scmp.eq.s32.totalorder %s29, 3
      %p197 = por %p195, %p196
      %p199 = scmp.ne.s32.totalorder %s184, %s198
      %p200 = scmp.eq.s32.totalorder %s29, 0
      %p201 = por %p199, %p200
      %s202 = ssub.s32 %s30, %s42
      %p203 = scmp.eq.s32.totalorder %s202, 0
      %s205 = sadd.s32 %s204, 1
      %s206 = scalar_select %p203, %s204, %s205
      %p209 = pneg %p203
      %p210 = scmp.eq.s32.totalorder %s23, 3
      %p211 = por %p209, %p210
      %p212 = scmp.ne.s32.totalorder %s204, %s207
      %p213 = scmp.eq.s32.totalorder %s23, 0
      %p214 = por %p212, %p213
      %p215 = scmp.ne.s32.totalorder %s204, %s207
      %p216 = scmp.eq.s32.totalorder %s28, 3
      %p217 = por %p215, %p216
      %p218 = scmp.ne.s32.totalorder %s207, %s208
      %p219 = scmp.eq.s32.totalorder %s28, 0
      %p220 = por %p218, %p219
      %p221 = scmp.ne.s32.totalorder %s207, %s208
      %p222 = scmp.eq.s32.totalorder %s29, 3
      %p223 = por %p221, %p222
      %p225 = scmp.ne.s32.totalorder %s208, %s224
      %p226 = scmp.eq.s32.totalorder %s29, 0
      %p227 = por %p225, %p226
      %s228 = ssub.s32 %s30, %s42
      %p229 = scmp.eq.s32.totalorder %s228, 0
      %s231 = sadd.s32 %s230, 1
      %s232 = scalar_select %p229, %s230, %s231
      %p235 = pneg %p229
      %p236 = scmp.eq.s32.totalorder %s23, 3
      %p237 = por %p235, %p236
      %p238 = scmp.ne.s32.totalorder %s230, %s233
      %p239 = scmp.eq.s32.totalorder %s23, 0
      %p240 = por %p238, %p239
      %p241 = scmp.ne.s32.totalorder %s230, %s233
      %p242 = scmp.eq.s32.totalorder %s28, 3
      %p243 = por %p241, %p242
      %p244 = scmp.ne.s32.totalorder %s233, %s234
      %p245 = scmp.eq.s32.totalorder %s28, 0
      %p246 = por %p244, %p245
      %p247 = scmp.ne.s32.totalorder %s233, %s234
      %p248 = scmp.eq.s32.totalorder %s29, 3
      %p249 = por %p247, %p248
      %p251 = scmp.ne.s32.totalorder %s234, %s250
      %p252 = scmp.eq.s32.totalorder %s29, 0
      %p253 = por %p251, %p252
      %s254 = ssub.s32 %s30, %s42
      %p255 = scmp.eq.s32.totalorder %s254, 0
      %s257 = sadd.s32 %s256, 1
      %s258 = scalar_select %p255, %s256, %s257
      %p261 = pneg %p255
      %p262 = scmp.eq.s32.totalorder %s23, 3
      %p263 = por %p261, %p262
      %p264 = scmp.ne.s32.totalorder %s256, %s259
      %p265 = scmp.eq.s32.totalorder %s23, 0
      %p266 = por %p264, %p265
      %p267 = scmp.ne.s32.totalorder %s256, %s259
      %p268 = scmp.eq.s32.totalorder %s28, 3
      %p269 = por %p267, %p268
      %p270 = scmp.ne.s32.totalorder %s259, %s260
      %p271 = scmp.eq.s32.totalorder %s28, 0
      %p272 = por %p270, %p271
      %p273 = scmp.ne.s32.totalorder %s259, %s260
      %p274 = scmp.eq.s32.totalorder %s29, 3
      %p275 = por %p273, %p274
      %p277 = scmp.ne.s32.totalorder %s260, %s276
      %p278 = scmp.eq.s32.totalorder %s29, 0
      %p279 = por %p277, %p278
      %s280 = ssub.s32 %s30, %s42
      %p281 = scmp.eq.s32.totalorder %s280, 0
      %s283 = sadd.s32 %s282, 1
      %s284 = scalar_select %p281, %s282, %s283
      %p287 = pneg %p281
      %p288 = scmp.eq.s32.totalorder %s23, 3
      %p289 = por %p287, %p288
      %p290 = scmp.ne.s32.totalorder %s282, %s285
      %p291 = scmp.eq.s32.totalorder %s23, 0
      %p292 = por %p290, %p291
      %p293 = scmp.ne.s32.totalorder %s282, %s285
      %p294 = scmp.eq.s32.totalorder %s28, 3
      %p295 = por %p293, %p294
      %p296 = scmp.ne.s32.totalorder %s285, %s286
      %p297 = scmp.eq.s32.totalorder %s28, 0
      %p298 = por %p296, %p297
      %p299 = scmp.ne.s32.totalorder %s285, %s286
      %p300 = scmp.eq.s32.totalorder %s29, 3
      %p301 = por %p299, %p300
      %p303 = scmp.ne.s32.totalorder %s286, %s302
      %p304 = scmp.eq.s32.totalorder %s29, 0
      %p305 = por %p303, %p304
      %p306 = scmp.le.s32.totalorder 1, %s23
      %p307 = scmp.lt.s32.totalorder %s23, 5
      %p308 = pnand %p306, %p307
      %p309 = pneg %p308
      // Predicated region
      $region9: #{tpu_custom_call.1} parent=5 // pred_check
        _
      $region10: #{tpu_custom_call.1} parent=5 // pred_check_branch
        %311 = sbr.rel (%p308) target = $region12
      $region11: #{tpu_custom_call.1} parent=5 // pred_region
        %s312 = ssub.s32 %s23, 1
        // Predicated region
        $region13: #{tpu_custom_call.1} parent=11 // pred_check
          %p313 = pneg %p110
        $region14: #{tpu_custom_call.1} parent=11 // pred_check_branch
          %315 = sbr.rel (%p313) target = $region16
        $region15: #{tpu_custom_call.1} parent=11 // pred_region
          _
        $region16: #{tpu_custom_call.1} parent=11 // pred_fallthru
          _
        // Predicated region
        $region17: #{tpu_custom_call.1} parent=11 // pred_check
          %p316 = pneg %p131
        $region18: #{tpu_custom_call.1} parent=11 // pred_check_branch
          %318 = sbr.rel (%p316) target = $region20
        $region19: #{tpu_custom_call.1} parent=11 // pred_region
          _
        $region20: #{tpu_custom_call.1} parent=11 // pred_fallthru
          _
        // Predicated region
        $region21: #{tpu_custom_call.1} parent=11 // pred_check
          %p319 = pneg %p152
        $region22: #{tpu_custom_call.1} parent=11 // pred_check_branch
          %321 = sbr.rel (%p319) target = $region24
        $region23: #{tpu_custom_call.1} parent=11 // pred_region
          _
        $region24: #{tpu_custom_call.1} parent=11 // pred_fallthru
          _
        // Predicated region
        $region25: #{tpu_custom_call.1} parent=11 // pred_check
          %p322 = pneg %p173
        $region26: #{tpu_custom_call.1} parent=11 // pred_check_branch
          %324 = sbr.rel (%p322) target = $region28
        $region27: #{tpu_custom_call.1} parent=11 // pred_region
          _
        $region28: #{tpu_custom_call.1} parent=11 // pred_fallthru
          _
        // Predicated region
        $region29: #{tpu_custom_call.1} parent=11 // pred_check
          %p325 = pneg %p194
        $region30: #{tpu_custom_call.1} parent=11 // pred_check_branch
          %327 = sbr.rel (%p325) target = $region32
        $region31: #{tpu_custom_call.1} parent=11 // pred_region
          _
        $region32: #{tpu_custom_call.1} parent=11 // pred_fallthru
          _
      $region12: #{tpu_custom_call.1} parent=5 // pred_fallthru
        _
      %p328 = scmp.lt.s32.totalorder %s23, 4
      // Predicated region
      $region33: #{tpu_custom_call.1} parent=5 // pred_check
        %p329 = pneg %p328
      $region34: #{tpu_custom_call.1} parent=5 // pred_check_branch
        %331 = sbr.rel (%p329) target = $region36
      $region35: #{tpu_custom_call.1} parent=5 // pred_region
        // Predicated region
        $region37: #{tpu_custom_call.1} parent=35 // pred_check
          %p332 = pneg %p57
        $region38: #{tpu_custom_call.1} parent=35 // pred_check_branch
          %334 = sbr.rel (%p332) target = $region40
        $region39: #{tpu_custom_call.1} parent=35 // pred_region
          %s335 = sand.u32 %s47, 1
          %s336 = sand.u32 %s47, 1
          %s337 = smul.addr %s336, 64
          %s338 = scalar_lea.vmem [#allocation3], %s337
          %s339 = smul.addr %s30, 16
          %s340 = sadd.s32 %s31, %s339
          %s341 = smul.addr %s340, 8
          %s342 = scalar_lea.vmem %s0, %s341
          // Predicated region
          $region41: #{tpu_custom_call.1} parent=39 // pred_check
            _
          $region42: #{tpu_custom_call.1} parent=39 // pred_check_branch
            %344 = sbr.rel (0) target = $region44
          $region43: #{tpu_custom_call.1} parent=39 // pred_region
            // Predicated region
            $region45: #{tpu_custom_call.1} parent=43 // pred_check
              _
            $region46: #{tpu_custom_call.1} parent=43 // pred_check_branch
              %346 = sbr.rel (0) target = $region48
            $region47: #{tpu_custom_call.1} parent=43 // pred_region
              // Predicated region
              $region60: #{tpu_custom_call.1} parent=47 // pred_check
                _
              $region61: #{tpu_custom_call.1} parent=47 // pred_check_branch
                %376 = sbr.rel (0) target = $region63
              $region62: #{tpu_custom_call.1} parent=47 // pred_region
                loop: start=0, step=1, limit=1
                $region64: #{tpu_custom_call.1} parent=62 // loop_pre_header
                  _
                $region65: #{tpu_custom_call.1} parent=62 // loop_header
                  %s378 = sphi 0, %s382
                  %p379 = scmp.ge.s32.totalorder %s378, 1
                  %s383 = sphi %s342, %s342
                  %s384 = sphi %s338, %s338
                $region66: #{tpu_custom_call.1} parent=62 // loop_header_branch
                  %381 = sbr.rel (%p379) target = $region70
                $region67: #{tpu_custom_call.1} parent=62 // loop_body
                  %v385 = vld [vmem:[%s383] sm:$0xff]
                  %386 = vst [vmem:[%s384] sm:$0xff] %v385
                  %v387 = vld [vmem:[%s383 + $0x10] sm:$0xff]
                  %388 = vst [vmem:[%s384 + $0x8] sm:$0xff] %v387
                  %v389 = vld [vmem:[%s383 + $0x20] sm:$0xff]
                  %390 = vst [vmem:[%s384 + $0x10] sm:$0xff] %v389
                  %v391 = vld [vmem:[%s383 + $0x30] sm:$0xff]
                  %392 = vst [vmem:[%s384 + $0x18] sm:$0xff] %v391
                  %v393 = vld [vmem:[%s383 + $0x40] sm:$0xff]
                  %394 = vst [vmem:[%s384 + $0x20] sm:$0xff] %v393
                  %v395 = vld [vmem:[%s383 + $0x50] sm:$0xff]
                  %396 = vst [vmem:[%s384 + $0x28] sm:$0xff] %v395
                  %v397 = vld [vmem:[%s383 + $0x60] sm:$0xff]
                  %398 = vst [vmem:[%s384 + $0x30] sm:$0xff] %v397
                  %v399 = vld [vmem:[%s383 + $0x70] sm:$0xff]
                  %400 = vst [vmem:[%s384 + $0x38] sm:$0xff] %v399
                $region68: #{tpu_custom_call.1} parent=62 // loop_footer
                  %s382 = sadd.s32 1, %s378
                $region69: #{tpu_custom_call.1} parent=62 // loop_footer_branch
                  %377 = sbr.rel target = $region65
                $region70: #{tpu_custom_call.1} parent=62 // loop_exit
                  _
              $region63: #{tpu_custom_call.1} parent=47 // pred_fallthru
                _
              // Predicated region
              $region71: #{tpu_custom_call.1} parent=47 // pred_check
                _
              $region72: #{tpu_custom_call.1} parent=47 // pred_check_branch
                %402 = sbr.rel target = $region74
              $region73: #{tpu_custom_call.1} parent=47 // pred_region
                _
              $region74: #{tpu_custom_call.1} parent=47 // pred_fallthru
                _
            $region48: #{tpu_custom_call.1} parent=43 // pred_fallthru
              _
            // Predicated region
            $region49: #{tpu_custom_call.1} parent=43 // pred_check
              _
            $region50: #{tpu_custom_call.1} parent=43 // pred_check_branch
              %348 = sbr.rel target = $region52
            $region51: #{tpu_custom_call.1} parent=43 // pred_region
              %s350 = ssub.s32 256, 1
              loop: start=0, step=1, limit=1
              $region53: #{tpu_custom_call.1} parent=51 // loop_pre_header
                _
              $region54: #{tpu_custom_call.1} parent=51 // loop_header
                %s352 = sphi 0, %s356
                %p353 = scmp.ge.s32.totalorder %s352, 1
                %s357 = sphi %s342, %s342
                %s358 = sphi %s338, %s338
              $region55: #{tpu_custom_call.1} parent=51 // loop_header_branch
                %355 = sbr.rel (%p353) target = $region59
              $region56: #{tpu_custom_call.1} parent=51 // loop_body
                %v359 = vld [vmem:[%s357] sm:%s350]
                %360 = vst [vmem:[%s358] sm:%s350] %v359
                %v361 = vld [vmem:[%s357 + $0x10] sm:%s350]
                %362 = vst [vmem:[%s358 + $0x8] sm:%s350] %v361
                %v363 = vld [vmem:[%s357 + $0x20] sm:%s350]
                %364 = vst [vmem:[%s358 + $0x10] sm:%s350] %v363
                %v365 = vld [vmem:[%s357 + $0x30] sm:%s350]
                %366 = vst [vmem:[%s358 + $0x18] sm:%s350] %v365
                %v367 = vld [vmem:[%s357 + $0x40] sm:%s350]
                %368 = vst [vmem:[%s358 + $0x20] sm:%s350] %v367
                %v369 = vld [vmem:[%s357 + $0x50] sm:%s350]
                %370 = vst [vmem:[%s358 + $0x28] sm:%s350] %v369
                %v371 = vld [vmem:[%s357 + $0x60] sm:%s350]
                %372 = vst [vmem:[%s358 + $0x30] sm:%s350] %v371
                %v373 = vld [vmem:[%s357 + $0x70] sm:%s350]
                %374 = vst [vmem:[%s358 + $0x38] sm:%s350] %v373
              $region57: #{tpu_custom_call.1} parent=51 // loop_footer
                %s356 = sadd.s32 1, %s352
              $region58: #{tpu_custom_call.1} parent=51 // loop_footer_branch
                %351 = sbr.rel target = $region54
              $region59: #{tpu_custom_call.1} parent=51 // loop_exit
                _
            $region52: #{tpu_custom_call.1} parent=43 // pred_fallthru
              _
          $region44: #{tpu_custom_call.1} parent=39 // pred_fallthru
            _
          %403 = vnop
        $region40: #{tpu_custom_call.1} parent=35 // pred_fallthru
          _
        // Predicated region
        $region75: #{tpu_custom_call.1} parent=35 // pred_check
          %p404 = pneg %p83
        $region76: #{tpu_custom_call.1} parent=35 // pred_check_branch
          %406 = sbr.rel (%p404) target = $region78
        $region77: #{tpu_custom_call.1} parent=35 // pred_region
          %p407 = scmp.lt.s32.totalorder %s30, 1
          %s408 = scalar_select %p407, %s30, 1
          %s409 = smul.addr %s408, 16
          %s410 = smul.addr %s409, 4
          %s411 = scalar_lea.vmem %s1, %s410
        $region78: #{tpu_custom_call.1} parent=35 // pred_fallthru
          _
      $region36: #{tpu_custom_call.1} parent=5 // pred_fallthru
        _
      %p412 = scmp.le.s32.totalorder 1, %s23
      %p413 = scmp.lt.s32.totalorder %s23, 5
      %p414 = pnand %p412, %p413
      %p415 = pneg %p414
      // Predicated region
      $region79: #{tpu_custom_call.1} parent=5 // pred_check
        _
      $region80: #{tpu_custom_call.1} parent=5 // pred_check_branch
        %417 = sbr.rel (%p414) target = $region82
      $region81: #{tpu_custom_call.1} parent=5 // pred_region
        %s418 = ssub.s32 %s23, 1
        %s419 = sand.u32 %s50, 1
        %s420 = sand.u32 %s50, 1
        %s421 = smul.addr %s420, 64
        %s422 = scalar_lea.vmem [#allocation3], %s421
        // Predicated region
        $region83: #{tpu_custom_call.1} parent=81 // pred_check
          %p423 = pneg %p63
        $region84: #{tpu_custom_call.1} parent=81 // pred_check_branch
          %425 = sbr.rel (%p423) target = $region86
        $region85: #{tpu_custom_call.1} parent=81 // pred_region
          _
        $region86: #{tpu_custom_call.1} parent=81 // pred_fallthru
          _
        %s426 = sand.u32 %s50, 1
        %s427 = sand.u32 %s50, 1
        %s428 = smul.addr %s427, 64
        %s429 = scalar_lea.vmem [#allocation3], %s428
        %p430 = pneg %p63
        %p431 = pneg %p60
        %p432 = scmp.lt.s32.totalorder %s32, 1
        %s433 = scalar_select %p432, %s32, 1
        %s434 = smul.addr %s433, 16
        %s435 = smul.addr %s434, 4
        %s436 = scalar_lea.vmem %s1, %s435
        %p437 = pneg %p89
        %p438 = pneg %p86
        %p439 = pneg %p110
        %p440 = pneg %p107
        %p441 = pneg %p131
        %p442 = pneg %p128
        %p443 = pneg %p152
        %p444 = pneg %p149
        %p445 = pneg %p173
        %p446 = pneg %p170
        %p447 = pneg %p194
        %p448 = pneg %p191
        %p449 = pneg %p220
        %p450 = pneg %p217
        %p451 = scmp.lt.s32.totalorder %s32, 1
        %s452 = scalar_select %p451, %s32, 1
        %s453 = smul.addr %s452, 8
        %s454 = smul.addr %s453, 8
        %s455 = scalar_lea.vmem %s7, %s454
        %p456 = pneg %p246
        %p457 = pneg %p243
        %p458 = scmp.lt.s32.totalorder %s32, 1
        %s459 = scalar_select %p458, %s32, 1
        %s460 = smul.addr %s459, 8
        %s461 = smul.addr %s460, 8
        %s462 = scalar_lea.vmem %s8, %s461
        %p463 = pneg %p272
        %p464 = pneg %p269
        %s465 = sand.u32 %s259, 1
        %s466 = scalar_lea.sflag [#allocation5], %s465
        %s467 = sand.u32 %s259, 1
        %s468 = smul.addr %s467, 32
        %s469 = scalar_lea.vmem [#allocation4], %s468
        %p470 = pneg %p298
        %p471 = pneg %p295
        %s472 = sand.u32 %s285, 1
        %s473 = scalar_lea.sflag [#allocation7], %s472
        %s474 = sand.u32 %s285, 1
        %s475 = smul.addr %s474, 32
        %s476 = scalar_lea.vmem [#allocation6], %s475
        %p477 = scmp.lt.s32.totalorder %s32, 1
        %s478 = scalar_select %p477, %s32, 1
        %s479 = smul.addr %s478, 16
        %s480 = smul.addr %s479, 4
        %s481 = scalar_lea.vmem %s1, %s480
        %p482 = scmp.lt.s32.totalorder %s32, 1
        %s483 = scalar_select %p482, %s32, 1
        %s484 = smul.addr %s483, 8
        %s485 = smul.addr %s484, 8
        %s486 = scalar_lea.vmem %s7, %s485
        %p487 = scmp.lt.s32.totalorder %s32, 1
        %s488 = scalar_select %p487, %s32, 1
        %s489 = smul.addr %s488, 8
        %s490 = smul.addr %s489, 8
        %s491 = scalar_lea.vmem %s8, %s490
        %p493 = scmp.eq.s32.totalorder %s33, 0
        // Predicated region
        $region87: #{tpu_custom_call.1} parent=81 // pred_check
          %p494 = pneg %p493
        $region88: #{tpu_custom_call.1} parent=81 // pred_check_branch
          %496 = sbr.rel (%p494) target = $region90
        $region89: #{tpu_custom_call.1} parent=81 // pred_region
          %vm497 = vcmask 15360
          %498 = vst.msk [vmem:[#allocation2] sm:$0xff] %vm497, 0.0
          %499 = vst.msk [vmem:[#allocation2 + $0x8] sm:$0xff] %vm497, 0.0
          %500 = vst.msk [vmem:[#allocation2 + $0x10] sm:$0xff] %vm497, 0.0
          %501 = vst.msk [vmem:[#allocation2 + $0x18] sm:$0xff] %vm497, 0.0
          %502 = vst.msk [vmem:[#allocation2 + $0x20] sm:$0xff] %vm497, 0.0
          %503 = vst.msk [vmem:[#allocation2 + $0x28] sm:$0xff] %vm497, 0.0
          %504 = vst.msk [vmem:[#allocation2 + $0x30] sm:$0xff] %vm497, 0.0
          %505 = vst.msk [vmem:[#allocation2 + $0x38] sm:$0xff] %vm497, 0.0
        $region90: #{tpu_custom_call.1} parent=81 // pred_fallthru
          _
        %v506 = vld [vmem:[%s422] sm:$0xff]
        %v507 = vld [vmem:[%s422 + $0x8] sm:$0xff]
        %v508 = vld [vmem:[%s422 + $0x10] sm:$0xff]
        %v509 = vld [vmem:[%s422 + $0x18] sm:$0xff]
        %v510 = vld [vmem:[%s422 + $0x20] sm:$0xff]
        %v511 = vld [vmem:[%s422 + $0x28] sm:$0xff]
        %v512 = vld [vmem:[%s422 + $0x30] sm:$0xff]
        %v513 = vld [vmem:[%s422 + $0x38] sm:$0xff]
        %v514 = vld [vmem:[#allocation2] sm:$0xff]
        %v515 = vld [vmem:[#allocation2 + $0x8] sm:$0xff]
        %v516 = vld [vmem:[#allocation2 + $0x10] sm:$0xff]
        %v517 = vld [vmem:[#allocation2 + $0x18] sm:$0xff]
        %v518 = vld [vmem:[#allocation2 + $0x20] sm:$0xff]
        %v519 = vld [vmem:[#allocation2 + $0x28] sm:$0xff]
        %v520 = vld [vmem:[#allocation2 + $0x30] sm:$0xff]
        %v521 = vld [vmem:[#allocation2 + $0x38] sm:$0xff]
        %522 = vadd.xlane.f32.xlu0 %v506
        %v523 = vpop.xlane.xlu0 %522
        %524 = vadd.xlane.f32.xlu0 %v507
        %v525 = vpop.xlane.xlu0 %524
        %526 = vadd.xlane.f32.xlu0 %v508
        %v527 = vpop.xlane.xlu0 %526
        %528 = vadd.xlane.f32.xlu0 %v509
        %v529 = vpop.xlane.xlu0 %528
        %530 = vadd.xlane.f32.xlu0 %v510
        %v531 = vpop.xlane.xlu0 %530
        %532 = vadd.xlane.f32.xlu0 %v511
        %v533 = vpop.xlane.xlu0 %532
        %534 = vadd.xlane.f32.xlu0 %v512
        %v535 = vpop.xlane.xlu0 %534
        %536 = vadd.xlane.f32.xlu0 %v513
        %v537 = vpop.xlane.xlu0 %536
        %v538 = vmul.f32 %v506, %v506
        %v539 = vmul.f32 %v507, %v507
        %v540 = vmul.f32 %v508, %v508
        %v541 = vmul.f32 %v509, %v509
        %v542 = vmul.f32 %v510, %v510
        %v543 = vmul.f32 %v511, %v511
        %v544 = vmul.f32 %v512, %v512
        %v545 = vmul.f32 %v513, %v513
        %546 = vadd.xlane.f32.xlu0 %v538
        %v547 = vpop.xlane.xlu0 %546
        %548 = vadd.xlane.f32.xlu0 %v539
        %v549 = vpop.xlane.xlu0 %548
        %550 = vadd.xlane.f32.xlu0 %v540
        %v551 = vpop.xlane.xlu0 %550
        %552 = vadd.xlane.f32.xlu0 %v541
        %v553 = vpop.xlane.xlu0 %552
        %554 = vadd.xlane.f32.xlu0 %v542
        %v555 = vpop.xlane.xlu0 %554
        %556 = vadd.xlane.f32.xlu0 %v543
        %v557 = vpop.xlane.xlu0 %556
        %558 = vadd.xlane.f32.xlu0 %v544
        %v559 = vpop.xlane.xlu0 %558
        %560 = vadd.xlane.f32.xlu0 %v545
        %v561 = vpop.xlane.xlu0 %560
        %vm562 = vcmask 7168
        %v563 = vsel %vm562, %v523, %v547
        %v564 = vsel %vm562, %v525, %v549
        %v565 = vsel %vm562, %v527, %v551
        %v566 = vsel %vm562, %v529, %v553
        %v567 = vsel %vm562, %v531, %v555
        %v568 = vsel %vm562, %v533, %v557
        %v569 = vsel %vm562, %v535, %v559
        %v570 = vsel %vm562, %v537, %v561
        %v571 = vadd.f32 %v514, %v563
        %v572 = vadd.f32 %v515, %v564
        %v573 = vadd.f32 %v516, %v565
        %v574 = vadd.f32 %v517, %v566
        %v575 = vadd.f32 %v518, %v567
        %v576 = vadd.f32 %v519, %v568
        %v577 = vadd.f32 %v520, %v569
        %v578 = vadd.f32 %v521, %v570
        %vm579 = vcmask 15360
        %580 = vst.msk [vmem:[#allocation2] sm:$0xff] %vm579, %v571
        %581 = vst.msk [vmem:[#allocation2 + $0x8] sm:$0xff] %vm579, %v572
        %582 = vst.msk [vmem:[#allocation2 + $0x10] sm:$0xff] %vm579, %v573
        %583 = vst.msk [vmem:[#allocation2 + $0x18] sm:$0xff] %vm579, %v574
        %584 = vst.msk [vmem:[#allocation2 + $0x20] sm:$0xff] %vm579, %v575
        %585 = vst.msk [vmem:[#allocation2 + $0x28] sm:$0xff] %vm579, %v576
        %586 = vst.msk [vmem:[#allocation2 + $0x30] sm:$0xff] %vm579, %v577
        %587 = vst.msk [vmem:[#allocation2 + $0x38] sm:$0xff] %vm579, %v578
        %p588 = scmp.eq.s32.totalorder %s33, 1
        // Predicated region
        $region91: #{tpu_custom_call.1} parent=81 // pred_check
          %p589 = pneg %p588
        $region92: #{tpu_custom_call.1} parent=81 // pred_check_branch
          %591 = sbr.rel (%p589) target = $region94
        $region93: #{tpu_custom_call.1} parent=81 // pred_region
          %v592 = vld [vmem:[%s2] sm:$0xff]
          %v593 = vld [vmem:[%s2 + $0x8] sm:$0xff]
          %v594 = vld [vmem:[%s2 + $0x10] sm:$0xff]
          %v595 = vld [vmem:[%s2 + $0x18] sm:$0xff]
          %v596 = vld [vmem:[%s2 + $0x20] sm:$0xff]
          %v597 = vld [vmem:[%s2 + $0x28] sm:$0xff]
          %v598 = vld [vmem:[%s2 + $0x30] sm:$0xff]
          %v599 = vld [vmem:[%s2 + $0x38] sm:$0xff]
          %v600 = vld [vmem:[#allocation2] sm:$0xff]
          %v601 = vld [vmem:[#allocation2 + $0x8] sm:$0xff]
          %v602 = vld [vmem:[#allocation2 + $0x10] sm:$0xff]
          %v603 = vld [vmem:[#allocation2 + $0x18] sm:$0xff]
          %v604 = vld [vmem:[#allocation2 + $0x20] sm:$0xff]
          %v605 = vld [vmem:[#allocation2 + $0x28] sm:$0xff]
          %v606 = vld [vmem:[#allocation2 + $0x30] sm:$0xff]
          %v607 = vld [vmem:[#allocation2 + $0x38] sm:$0xff]
          %vm608 = vcmask 523264
          %v610 = vsel %vm608, %v592, 0
          %v613 = vsel %vm608, %v593, 0
          %v616 = vsel %vm608, %v594, 0
          %v619 = vsel %vm608, %v595, 0
          %v622 = vsel %vm608, %v596, 0
          %v625 = vsel %vm608, %v597, 0
          %v628 = vsel %vm608, %v598, 0
          %v631 = vsel %vm608, %v599, 0
          %633 = vmatprep.subr.mxu0 0.0
          %634 = vmatpush1.msra.mxu0 0.0
          %635 = vmatprep.subr.mxu0 0.0
          %636 = vmatpush1.msra.mxu0 0.0
          %637 = vmatprep.subr.mxu0 0.0
          %638 = vmatpush1.msra.mxu0 0.0
          %639 = vmatprep.subr.mxu0 0.0
          %640 = vmatpush1.msra.mxu0 0.0
          %641 = vmatprep.subr.mxu0 0.0
          %642 = vmatpush1.msra.mxu0 0.0
          %643 = vmatprep.subr.mxu0 0.0
          %644 = vmatpush1.msra.mxu0 0.0
          %645 = vmatprep.subr.mxu0 0.0
          %646 = vmatpush1.msra.mxu0 0.0
          %647 = vmatprep.subr.mxu0 0.0
          %648 = vmatpush1.msra.mxu0 0.0
          %649 = vmatprep.subr.mxu0 0.0
          %v650 = vand.u32 %v607, 4294901760
          %651 = vmatpush1.msra.mxu0 %v650
          %652 = vmatprep.subr.mxu0 0.0
          %v653 = vand.u32 %v606, 4294901760
          %654 = vmatpush1.msra.mxu0 %v653
          %655 = vmatprep.subr.mxu0 0.0
          %v656 = vand.u32 %v605, 4294901760
          %657 = vmatpush1.msra.mxu0 %v656
          %658 = vmatprep.subr.mxu0 0.0
          %v659 = vand.u32 %v604, 4294901760
          %660 = vmatpush1.msra.mxu0 %v659
          %661 = vmatprep.subr.mxu0 0.0
          %v662 = vand.u32 %v603, 4294901760
          %663 = vmatpush1.msra.mxu0 %v662
          %664 = vmatprep.subr.mxu0 0.0
          %v665 = vand.u32 %v602, 4294901760
          %666 = vmatpush1.msra.mxu0 %v665
          %667 = vmatprep.subr.mxu0 0.0
          %v668 = vand.u32 %v601, 4294901760
          %669 = vmatpush1.msra.mxu0 %v668
          %670 = vmatprep.subr.mxu0 0.0
          %v671 = vand.u32 %v600, 4294901760
          %672 = vmatpush1.msra.mxu0 %v671
          %673 = vmatprep.subr.mxu0 0.0
          %674 = vmatpush2.msra.mxu0 0.0
          %675 = vmatprep.subr.mxu0 0.0
          %676 = vmatpush2.msra.mxu0 0.0
          %677 = vmatprep.subr.mxu0 0.0
          %678 = vmatpush2.msra.mxu0 0.0
          %679 = vmatprep.subr.mxu0 0.0
          %680 = vmatpush2.msra.mxu0 0.0
          %681 = vmatprep.subr.mxu0 0.0
          %682 = vmatpush2.msra.mxu0 0.0
          %683 = vmatprep.subr.mxu0 0.0
          %684 = vmatpush2.msra.mxu0 0.0
          %685 = vmatprep.subr.mxu0 0.0
          %686 = vmatpush2.msra.mxu0 0.0
          %687 = vmatprep.subr.mxu0 0.0
          %688 = vmatpush2.msra.mxu0 0.0
          %689 = vmatprep.subr.mxu0 0.0
          %690 = vmatpush2.msra.mxu0 0.0
          %691 = vmatprep.subr.mxu0 0.0
          %692 = vmatpush2.msra.mxu0 0.0
          %693 = vmatprep.subr.mxu0 0.0
          %694 = vmatpush2.msra.mxu0 0.0
          %695 = vmatprep.subr.mxu0 0.0
          %696 = vmatpush2.msra.mxu0 0.0
          %697 = vmatprep.subr.mxu0 0.0
          %698 = vmatpush2.msra.mxu0 0.0
          %699 = vmatprep.subr.mxu0 0.0
          %700 = vmatpush2.msra.mxu0 0.0
          %701 = vmatprep.subr.mxu0 0.0
          %702 = vmatpush2.msra.mxu0 0.0
          %703 = vmatprep.subr.mxu0 0.0
          %704 = vmatpush2.msra.mxu0 0.0
          %705 = vmatprep.mubr.f32.mxu0 0.0
          %v706 = vand.u32 %v610, 4294901760
          %v707 = vsub.f32 %v610, %v706
          %v708 = vand.u32 %v707, 4294901760
          %v709 = vsub.f32 %v707, %v708
          %v710 = vand.u32 %v709, 4294901760
          %711 = vmatmul.mubr.f32.gmra.mxu0 %v710
          %v712 = vpop.f32.mrf.mxu0
          %v713 = vadd.f32 0.0, %v712
          %v714 = vpop.f32.mrf.mxu0
          %715 = vmatprep.mubr.f32.mxu0 0.0
          %v716 = vand.u32 %v613, 4294901760
          %v717 = vsub.f32 %v613, %v716
          %v718 = vand.u32 %v717, 4294901760
          %v719 = vsub.f32 %v717, %v718
          %v720 = vand.u32 %v719, 4294901760
          %721 = vmatmul.mubr.f32.gmra.mxu0 %v720
          %v722 = vpop.f32.mrf.mxu0
          %v723 = vadd.f32 0.0, %v722
          %v724 = vpop.f32.mrf.mxu0
          %725 = vmatprep.mubr.f32.mxu0 0.0
          %v726 = vand.u32 %v616, 4294901760
          %v727 = vsub.f32 %v616, %v726
          %v728 = vand.u32 %v727, 4294901760
          %v729 = vsub.f32 %v727, %v728
          %v730 = vand.u32 %v729, 4294901760
          %731 = vmatmul.mubr.f32.gmra.mxu0 %v730
          %v732 = vpop.f32.mrf.mxu0
          %v733 = vadd.f32 0.0, %v732
          %v734 = vpop.f32.mrf.mxu0
          %735 = vmatprep.mubr.f32.mxu0 0.0
          %v736 = vand.u32 %v619, 4294901760
          %v737 = vsub.f32 %v619, %v736
          %v738 = vand.u32 %v737, 4294901760
          %v739 = vsub.f32 %v737, %v738
          %v740 = vand.u32 %v739, 4294901760
          %741 = vmatmul.mubr.f32.gmra.mxu0 %v740
          %v742 = vpop.f32.mrf.mxu0
          %v743 = vadd.f32 0.0, %v742
          %v744 = vpop.f32.mrf.mxu0
          %745 = vmatprep.mubr.f32.mxu0 0.0
          %v746 = vand.u32 %v622, 4294901760
          %v747 = vsub.f32 %v622, %v746
          %v748 = vand.u32 %v747, 4294901760
          %v749 = vsub.f32 %v747, %v748
          %v750 = vand.u32 %v749, 4294901760
          %751 = vmatmul.mubr.f32.gmra.mxu0 %v750
          %v752 = vpop.f32.mrf.mxu0
          %v753 = vadd.f32 0.0, %v752
          %v754 = vpop.f32.mrf.mxu0
          %755 = vmatprep.mubr.f32.mxu0 0.0
          %v756 = vand.u32 %v625, 4294901760
          %v757 = vsub.f32 %v625, %v756
          %v758 = vand.u32 %v757, 4294901760
          %v759 = vsub.f32 %v757, %v758
          %v760 = vand.u32 %v759, 4294901760
          %761 = vmatmul.mubr.f32.gmra.mxu0 %v760
          %v762 = vpop.f32.mrf.mxu0
          %v763 = vadd.f32 0.0, %v762
          %v764 = vpop.f32.mrf.mxu0
          %765 = vmatprep.mubr.f32.mxu0 0.0
          %v766 = vand.u32 %v628, 4294901760
          %v767 = vsub.f32 %v628, %v766
          %v768 = vand.u32 %v767, 4294901760
          %v769 = vsub.f32 %v767, %v768
          %v770 = vand.u32 %v769, 4294901760
          %771 = vmatmul.mubr.f32.gmra.mxu0 %v770
          %v772 = vpop.f32.mrf.mxu0
          %v773 = vadd.f32 0.0, %v772
          %v774 = vpop.f32.mrf.mxu0
          %775 = vmatprep.mubr.f32.mxu0 0.0
          %v776 = vand.u32 %v631, 4294901760
          %v777 = vsub.f32 %v631, %v776
          %v778 = vand.u32 %v777, 4294901760
          %v779 = vsub.f32 %v777, %v778
          %v780 = vand.u32 %v779, 4294901760
          %781 = vmatmul.mubr.f32.gmra.mxu0 %v780
          %v782 = vpop.f32.mrf.mxu0
          %v783 = vadd.f32 0.0, %v782
          %v784 = vpop.f32.mrf.mxu0
          %785 = vdwg.mxu0
          %786 = vmatprep.subr.mxu0 0.0
          %787 = vmatpush1.msra.mxu0 0.0
          %788 = vmatprep.subr.mxu0 0.0
          %789 = vmatpush1.msra.mxu0 0.0
          %790 = vmatprep.subr.mxu0 0.0
          %791 = vmatpush1.msra.mxu0 0.0
          %792 = vmatprep.subr.mxu0 0.0
          %793 = vmatpush1.msra.mxu0 0.0
          %794 = vmatprep.subr.mxu0 0.0
          %795 = vmatpush1.msra.mxu0 0.0
          %796 = vmatprep.subr.mxu0 0.0
          %797 = vmatpush1.msra.mxu0 0.0
          %798 = vmatprep.subr.mxu0 0.0
          %799 = vmatpush1.msra.mxu0 0.0
          %800 = vmatprep.subr.mxu0 0.0
          %801 = vmatpush1.msra.mxu0 0.0
          %802 = vmatprep.subr.mxu0 0.0
          %v803 = vand.u32 %v607, 4294901760
          %v804 = vsub.f32 %v607, %v803
          %v805 = vand.u32 %v804, 4294901760
          %v806 = vsub.f32 %v804, %v805
          %v807 = vand.u32 %v806, 4294901760
          %808 = vmatpush1.msra.mxu0 %v807
          %809 = vmatprep.subr.mxu0 0.0
          %v810 = vand.u32 %v606, 4294901760
          %v811 = vsub.f32 %v606, %v810
          %v812 = vand.u32 %v811, 4294901760
          %v813 = vsub.f32 %v811, %v812
          %v814 = vand.u32 %v813, 4294901760
          %815 = vmatpush1.msra.mxu0 %v814
          %816 = vmatprep.subr.mxu0 0.0
          %v817 = vand.u32 %v605, 4294901760
          %v818 = vsub.f32 %v605, %v817
          %v819 = vand.u32 %v818, 4294901760
          %v820 = vsub.f32 %v818, %v819
          %v821 = vand.u32 %v820, 4294901760
          %822 = vmatpush1.msra.mxu0 %v821
          %823 = vmatprep.subr.mxu0 0.0
          %v824 = vand.u32 %v604, 4294901760
          %v825 = vsub.f32 %v604, %v824
          %v826 = vand.u32 %v825, 4294901760
          %v827 = vsub.f32 %v825, %v826
          %v828 = vand.u32 %v827, 4294901760
          %829 = vmatpush1.msra.mxu0 %v828
          %830 = vmatprep.subr.mxu0 0.0
          %v831 = vand.u32 %v603, 4294901760
          %v832 = vsub.f32 %v603, %v831
          %v833 = vand.u32 %v832, 4294901760
          %v834 = vsub.f32 %v832, %v833
          %v835 = vand.u32 %v834, 4294901760
          %836 = vmatpush1.msra.mxu0 %v835
          %837 = vmatprep.subr.mxu0 0.0
          %v838 = vand.u32 %v602, 4294901760
          %v839 = vsub.f32 %v602, %v838
          %v840 = vand.u32 %v839, 4294901760
          %v841 = vsub.f32 %v839, %v840
          %v842 = vand.u32 %v841, 4294901760
          %843 = vmatpush1.msra.mxu0 %v842
          %844 = vmatprep.subr.mxu0 0.0
          %v845 = vand.u32 %v601, 4294901760
          %v846 = vsub.f32 %v601, %v845
          %v847 = vand.u32 %v846, 4294901760
          %v848 = vsub.f32 %v846, %v847
          %v849 = vand.u32 %v848, 4294901760
          %850 = vmatpush1.msra.mxu0 %v849
          %851 = vmatprep.subr.mxu0 0.0
          %v852 = vand.u32 %v600, 4294901760
          %v853 = vsub.f32 %v600, %v852
          %v854 = vand.u32 %v853, 4294901760
          %v855 = vsub.f32 %v853, %v854
          %v856 = vand.u32 %v855, 4294901760
          %857 = vmatpush1.msra.mxu0 %v856
          %858 = vmatprep.subr.mxu0 0.0
          %859 = vmatpush2.msra.mxu0 0.0
          %860 = vmatprep.subr.mxu0 0.0
          %861 = vmatpush2.msra.mxu0 0.0
          %862 = vmatprep.subr.mxu0 0.0
          %863 = vmatpush2.msra.mxu0 0.0
          %864 = vmatprep.subr.mxu0 0.0
          %865 = vmatpush2.msra.mxu0 0.0
          %866 = vmatprep.subr.mxu0 0.0
          %867 = vmatpush2.msra.mxu0 0.0
          %868 = vmatprep.subr.mxu0 0.0
          %869 = vmatpush2.msra.mxu0 0.0
          %870 = vmatprep.subr.mxu0 0.0
          %871 = vmatpush2.msra.mxu0 0.0
          %872 = vmatprep.subr.mxu0 0.0
          %873 = vmatpush2.msra.mxu0 0.0
          %874 = vmatprep.subr.mxu0 0.0
          %875 = vmatpush2.msra.mxu0 0.0
          %876 = vmatprep.subr.mxu0 0.0
          %877 = vmatpush2.msra.mxu0 0.0
          %878 = vmatprep.subr.mxu0 0.0
          %879 = vmatpush2.msra.mxu0 0.0
          %880 = vmatprep.subr.mxu0 0.0
          %881 = vmatpush2.msra.mxu0 0.0
          %882 = vmatprep.subr.mxu0 0.0
          %883 = vmatpush2.msra.mxu0 0.0
          %884 = vmatprep.subr.mxu0 0.0
          %885 = vmatpush2.msra.mxu0 0.0
          %886 = vmatprep.subr.mxu0 0.0
          %887 = vmatpush2.msra.mxu0 0.0
          %888 = vmatprep.subr.mxu0 0.0
          %889 = vmatpush2.msra.mxu0 0.0
          %890 = vmatprep.mubr.f32.mxu0 0.0
          %v891 = vand.u32 %v610, 4294901760
          %892 = vmatmul.mubr.f32.gmra.mxu0 %v891
          %v893 = vpop.f32.mrf.mxu0
          %v894 = vadd.f32 %v713, %v893
          %v895 = vpop.f32.mrf.mxu0
          %896 = vmatprep.mubr.f32.mxu0 0.0
          %v897 = vand.u32 %v613, 4294901760
          %898 = vmatmul.mubr.f32.gmra.mxu0 %v897
          %v899 = vpop.f32.mrf.mxu0
          %v900 = vadd.f32 %v723, %v899
          %v901 = vpop.f32.mrf.mxu0
          %902 = vmatprep.mubr.f32.mxu0 0.0
          %v903 = vand.u32 %v616, 4294901760
          %904 = vmatmul.mubr.f32.gmra.mxu0 %v903
          %v905 = vpop.f32.mrf.mxu0
          %v906 = vadd.f32 %v733, %v905
          %v907 = vpop.f32.mrf.mxu0
          %908 = vmatprep.mubr.f32.mxu0 0.0
          %v909 = vand.u32 %v619, 4294901760
          %910 = vmatmul.mubr.f32.gmra.mxu0 %v909
          %v911 = vpop.f32.mrf.mxu0
          %v912 = vadd.f32 %v743, %v911
          %v913 = vpop.f32.mrf.mxu0
          %914 = vmatprep.mubr.f32.mxu0 0.0
          %v915 = vand.u32 %v622, 4294901760
          %916 = vmatmul.mubr.f32.gmra.mxu0 %v915
          %v917 = vpop.f32.mrf.mxu0
          %v918 = vadd.f32 %v753, %v917
          %v919 = vpop.f32.mrf.mxu0
          %920 = vmatprep.mubr.f32.mxu0 0.0
          %v921 = vand.u32 %v625, 4294901760
          %922 = vmatmul.mubr.f32.gmra.mxu0 %v921
          %v923 = vpop.f32.mrf.mxu0
          %v924 = vadd.f32 %v763, %v923
          %v925 = vpop.f32.mrf.mxu0
          %926 = vmatprep.mubr.f32.mxu0 0.0
          %v927 = vand.u32 %v628, 4294901760
          %928 = vmatmul.mubr.f32.gmra.mxu0 %v927
          %v929 = vpop.f32.mrf.mxu0
          %v930 = vadd.f32 %v773, %v929
          %v931 = vpop.f32.mrf.mxu0
          %932 = vmatprep.mubr.f32.mxu0 0.0
          %v933 = vand.u32 %v631, 4294901760
          %934 = vmatmul.mubr.f32.gmra.mxu0 %v933
          %v935 = vpop.f32.mrf.mxu0
          %v936 = vadd.f32 %v783, %v935
          %v937 = vpop.f32.mrf.mxu0
          %938 = vdwg.mxu0
          %939 = vmatprep.subr.mxu0 0.0
          %940 = vmatpush1.msra.mxu0 0.0
          %941 = vmatprep.subr.mxu0 0.0
          %942 = vmatpush1.msra.mxu0 0.0
          %943 = vmatprep.subr.mxu0 0.0
          %944 = vmatpush1.msra.mxu0 0.0
          %945 = vmatprep.subr.mxu0 0.0
          %946 = vmatpush1.msra.mxu0 0.0
          %947 = vmatprep.subr.mxu0 0.0
          %948 = vmatpush1.msra.mxu0 0.0
          %949 = vmatprep.subr.mxu0 0.0
          %950 = vmatpush1.msra.mxu0 0.0
          %951 = vmatprep.subr.mxu0 0.0
          %952 = vmatpush1.msra.mxu0 0.0
          %953 = vmatprep.subr.mxu0 0.0
          %954 = vmatpush1.msra.mxu0 0.0
          %955 = vmatprep.subr.mxu0 0.0
          %v956 = vand.u32 %v607, 4294901760
          %v957 = vsub.f32 %v607, %v956
          %958 = vmatpush1.msra.mxu0 %v957
          %959 = vmatprep.subr.mxu0 0.0
          %v960 = vand.u32 %v606, 4294901760
          %v961 = vsub.f32 %v606, %v960
          %962 = vmatpush1.msra.mxu0 %v961
          %963 = vmatprep.subr.mxu0 0.0
          %v964 = vand.u32 %v605, 4294901760
          %v965 = vsub.f32 %v605, %v964
          %966 = vmatpush1.msra.mxu0 %v965
          %967 = vmatprep.subr.mxu0 0.0
          %v968 = vand.u32 %v604, 4294901760
          %v969 = vsub.f32 %v604, %v968
          %970 = vmatpush1.msra.mxu0 %v969
          %971 = vmatprep.subr.mxu0 0.0
          %v972 = vand.u32 %v603, 4294901760
          %v973 = vsub.f32 %v603, %v972
          %974 = vmatpush1.msra.mxu0 %v973
          %975 = vmatprep.subr.mxu0 0.0
          %v976 = vand.u32 %v602, 4294901760
          %v977 = vsub.f32 %v602, %v976
          %978 = vmatpush1.msra.mxu0 %v977
          %979 = vmatprep.subr.mxu0 0.0
          %v980 = vand.u32 %v601, 4294901760
          %v981 = vsub.f32 %v601, %v980
          %982 = vmatpush1.msra.mxu0 %v981
          %983 = vmatprep.subr.mxu0 0.0
          %v984 = vand.u32 %v600, 4294901760
          %v985 = vsub.f32 %v600, %v984
          %986 = vmatpush1.msra.mxu0 %v985
          %987 = vmatprep.subr.mxu0 0.0
          %988 = vmatpush2.msra.mxu0 0.0
          %989 = vmatprep.subr.mxu0 0.0
          %990 = vmatpush2.msra.mxu0 0.0
          %991 = vmatprep.subr.mxu0 0.0
          %992 = vmatpush2.msra.mxu0 0.0
          %993 = vmatprep.subr.mxu0 0.0
          %994 = vmatpush2.msra.mxu0 0.0
          %995 = vmatprep.subr.mxu0 0.0
          %996 = vmatpush2.msra.mxu0 0.0
          %997 = vmatprep.subr.mxu0 0.0
          %998 = vmatpush2.msra.mxu0 0.0
          %999 = vmatprep.subr.mxu0 0.0
          %1000 = vmatpush2.msra.mxu0 0.0
          %1001 = vmatprep.subr.mxu0 0.0
          %1002 = vmatpush2.msra.mxu0 0.0
          %1003 = vmatprep.subr.mxu0 0.0
          %1004 = vmatpush2.msra.mxu0 0.0
          %1005 = vmatprep.subr.mxu0 0.0
          %1006 = vmatpush2.msra.mxu0 0.0
          %1007 = vmatprep.subr.mxu0 0.0
          %1008 = vmatpush2.msra.mxu0 0.0
          %1009 = vmatprep.subr.mxu0 0.0
          %1010 = vmatpush2.msra.mxu0 0.0
          %1011 = vmatprep.subr.mxu0 0.0
          %1012 = vmatpush2.msra.mxu0 0.0
          %1013 = vmatprep.subr.mxu0 0.0
          %1014 = vmatpush2.msra.mxu0 0.0
          %1015 = vmatprep.subr.mxu0 0.0
          %1016 = vmatpush2.msra.mxu0 0.0
          %1017 = vmatprep.subr.mxu0 0.0
          %1018 = vmatpush2.msra.mxu0 0.0
          %1019 = vmatprep.mubr.f32.mxu0 0.0
          %v1020 = vand.u32 %v610, 4294901760
          %v1021 = vsub.f32 %v610, %v1020
          %1022 = vmatmul.mubr.f32.gmra.mxu0 %v1021
          %v1023 = vpop.f32.mrf.mxu0
          %v1024 = vadd.f32 %v894, %v1023
          %v1025 = vpop.f32.mrf.mxu0
          %1026 = vmatprep.mubr.f32.mxu0 0.0
          %v1027 = vand.u32 %v613, 4294901760
          %v1028 = vsub.f32 %v613, %v1027
          %1029 = vmatmul.mubr.f32.gmra.mxu0 %v1028
          %v1030 = vpop.f32.mrf.mxu0
          %v1031 = vadd.f32 %v900, %v1030
          %v1032 = vpop.f32.mrf.mxu0
          %1033 = vmatprep.mubr.f32.mxu0 0.0
          %v1034 = vand.u32 %v616, 4294901760
          %v1035 = vsub.f32 %v616, %v1034
          %1036 = vmatmul.mubr.f32.gmra.mxu0 %v1035
          %v1037 = vpop.f32.mrf.mxu0
          %v1038 = vadd.f32 %v906, %v1037
          %v1039 = vpop.f32.mrf.mxu0
          %1040 = vmatprep.mubr.f32.mxu0 0.0
          %v1041 = vand.u32 %v619, 4294901760
          %v1042 = vsub.f32 %v619, %v1041
          %1043 = vmatmul.mubr.f32.gmra.mxu0 %v1042
          %v1044 = vpop.f32.mrf.mxu0
          %v1045 = vadd.f32 %v912, %v1044
          %v1046 = vpop.f32.mrf.mxu0
          %1047 = vmatprep.mubr.f32.mxu0 0.0
          %v1048 = vand.u32 %v622, 4294901760
          %v1049 = vsub.f32 %v622, %v1048
          %1050 = vmatmul.mubr.f32.gmra.mxu0 %v1049
          %v1051 = vpop.f32.mrf.mxu0
          %v1052 = vadd.f32 %v918, %v1051
          %v1053 = vpop.f32.mrf.mxu0
          %1054 = vmatprep.mubr.f32.mxu0 0.0
          %v1055 = vand.u32 %v625, 4294901760
          %v1056 = vsub.f32 %v625, %v1055
          %1057 = vmatmul.mubr.f32.gmra.mxu0 %v1056
          %v1058 = vpop.f32.mrf.mxu0
          %v1059 = vadd.f32 %v924, %v1058
          %v1060 = vpop.f32.mrf.mxu0
          %1061 = vmatprep.mubr.f32.mxu0 0.0
          %v1062 = vand.u32 %v628, 4294901760
          %v1063 = vsub.f32 %v628, %v1062
          %1064 = vmatmul.mubr.f32.gmra.mxu0 %v1063
          %v1065 = vpop.f32.mrf.mxu0
          %v1066 = vadd.f32 %v930, %v1065
          %v1067 = vpop.f32.mrf.mxu0
          %1068 = vmatprep.mubr.f32.mxu0 0.0
          %v1069 = vand.u32 %v631, 4294901760
          %v1070 = vsub.f32 %v631, %v1069
          %1071 = vmatmul.mubr.f32.gmra.mxu0 %v1070
          %v1072 = vpop.f32.mrf.mxu0
          %v1073 = vadd.f32 %v936, %v1072
          %v1074 = vpop.f32.mrf.mxu0
          %1075 = vdwg.mxu0
          %1076 = vmatprep.subr.mxu0 0.0
          %1077 = vmatpush1.msra.mxu0 0.0
          %1078 = vmatprep.subr.mxu0 0.0
          %1079 = vmatpush1.msra.mxu0 0.0
          %1080 = vmatprep.subr.mxu0 0.0
          %1081 = vmatpush1.msra.mxu0 0.0
          %1082 = vmatprep.subr.mxu0 0.0
          %1083 = vmatpush1.msra.mxu0 0.0
          %1084 = vmatprep.subr.mxu0 0.0
          %1085 = vmatpush1.msra.mxu0 0.0
          %1086 = vmatprep.subr.mxu0 0.0
          %1087 = vmatpush1.msra.mxu0 0.0
          %1088 = vmatprep.subr.mxu0 0.0
          %1089 = vmatpush1.msra.mxu0 0.0
          %1090 = vmatprep.subr.mxu0 0.0
          %1091 = vmatpush1.msra.mxu0 0.0
          %1092 = vmatprep.subr.mxu0 0.0
          %v1093 = vand.u32 %v607, 4294901760
          %1094 = vmatpush1.msra.mxu0 %v1093
          %1095 = vmatprep.subr.mxu0 0.0
          %v1096 = vand.u32 %v606, 4294901760
          %1097 = vmatpush1.msra.mxu0 %v1096
          %1098 = vmatprep.subr.mxu0 0.0
          %v1099 = vand.u32 %v605, 4294901760
          %1100 = vmatpush1.msra.mxu0 %v1099
          %1101 = vmatprep.subr.mxu0 0.0
          %v1102 = vand.u32 %v604, 4294901760
          %1103 = vmatpush1.msra.mxu0 %v1102
          %1104 = vmatprep.subr.mxu0 0.0
          %v1105 = vand.u32 %v603, 4294901760
          %1106 = vmatpush1.msra.mxu0 %v1105
          %1107 = vmatprep.subr.mxu0 0.0
          %v1108 = vand.u32 %v602, 4294901760
          %1109 = vmatpush1.msra.mxu0 %v1108
          %1110 = vmatprep.subr.mxu0 0.0
          %v1111 = vand.u32 %v601, 4294901760
          %1112 = vmatpush1.msra.mxu0 %v1111
          %1113 = vmatprep.subr.mxu0 0.0
          %v1114 = vand.u32 %v600, 4294901760
          %1115 = vmatpush1.msra.mxu0 %v1114
          %1116 = vmatprep.subr.mxu0 0.0
          %1117 = vmatpush2.msra.mxu0 0.0
          %1118 = vmatprep.subr.mxu0 0.0
          %1119 = vmatpush2.msra.mxu0 0.0
          %1120 = vmatprep.subr.mxu0 0.0
          %1121 = vmatpush2.msra.mxu0 0.0
          %1122 = vmatprep.subr.mxu0 0.0
          %1123 = vmatpush2.msra.mxu0 0.0
          %1124 = vmatprep.subr.mxu0 0.0
          %1125 = vmatpush2.msra.mxu0 0.0
          %1126 = vmatprep.subr.mxu0 0.0
          %1127 = vmatpush2.msra.mxu0 0.0
          %1128 = vmatprep.subr.mxu0 0.0
          %1129 = vmatpush2.msra.mxu0 0.0
          %1130 = vmatprep.subr.mxu0 0.0
          %1131 = vmatpush2.msra.mxu0 0.0
          %1132 = vmatprep.subr.mxu0 0.0
          %1133 = vmatpush2.msra.mxu0 0.0
          %1134 = vmatprep.subr.mxu0 0.0
          %1135 = vmatpush2.msra.mxu0 0.0
          %1136 = vmatprep.subr.mxu0 0.0
          %1137 = vmatpush2.msra.mxu0 0.0
          %1138 = vmatprep.subr.mxu0 0.0
          %1139 = vmatpush2.msra.mxu0 0.0
          %1140 = vmatprep.subr.mxu0 0.0
          %1141 = vmatpush2.msra.mxu0 0.0
          %1142 = vmatprep.subr.mxu0 0.0
          %1143 = vmatpush2.msra.mxu0 0.0
          %1144 = vmatprep.subr.mxu0 0.0
          %1145 = vmatpush2.msra.mxu0 0.0
          %1146 = vmatprep.subr.mxu0 0.0
          %1147 = vmatpush2.msra.mxu0 0.0
          %1148 = vmatprep.mubr.f32.mxu0 0.0
          %v1149 = vand.u32 %v610, 4294901760
          %v1150 = vsub.f32 %v610, %v1149
          %v1151 = vand.u32 %v1150, 4294901760
          %1152 = vmatmul.mubr.f32.gmra.mxu0 %v1151
          %v1153 = vpop.f32.mrf.mxu0
          %v1154 = vadd.f32 %v1024, %v1153
          %v1155 = vpop.f32.mrf.mxu0
          %1156 = vmatprep.mubr.f32.mxu0 0.0
          %v1157 = vand.u32 %v613, 4294901760
          %v1158 = vsub.f32 %v613, %v1157
          %v1159 = vand.u32 %v1158, 4294901760
          %1160 = vmatmul.mubr.f32.gmra.mxu0 %v1159
          %v1161 = vpop.f32.mrf.mxu0
          %v1162 = vadd.f32 %v1031, %v1161
          %v1163 = vpop.f32.mrf.mxu0
          %1164 = vmatprep.mubr.f32.mxu0 0.0
          %v1165 = vand.u32 %v616, 4294901760
          %v1166 = vsub.f32 %v616, %v1165
          %v1167 = vand.u32 %v1166, 4294901760
          %1168 = vmatmul.mubr.f32.gmra.mxu0 %v1167
          %v1169 = vpop.f32.mrf.mxu0
          %v1170 = vadd.f32 %v1038, %v1169
          %v1171 = vpop.f32.mrf.mxu0
          %1172 = vmatprep.mubr.f32.mxu0 0.0
          %v1173 = vand.u32 %v619, 4294901760
          %v1174 = vsub.f32 %v619, %v1173
          %v1175 = vand.u32 %v1174, 4294901760
          %1176 = vmatmul.mubr.f32.gmra.mxu0 %v1175
          %v1177 = vpop.f32.mrf.mxu0
          %v1178 = vadd.f32 %v1045, %v1177
          %v1179 = vpop.f32.mrf.mxu0
          %1180 = vmatprep.mubr.f32.mxu0 0.0
          %v1181 = vand.u32 %v622, 4294901760
          %v1182 = vsub.f32 %v622, %v1181
          %v1183 = vand.u32 %v1182, 4294901760
          %1184 = vmatmul.mubr.f32.gmra.mxu0 %v1183
          %v1185 = vpop.f32.mrf.mxu0
          %v1186 = vadd.f32 %v1052, %v1185
          %v1187 = vpop.f32.mrf.mxu0
          %1188 = vmatprep.mubr.f32.mxu0 0.0
          %v1189 = vand.u32 %v625, 4294901760
          %v1190 = vsub.f32 %v625, %v1189
          %v1191 = vand.u32 %v1190, 4294901760
          %1192 = vmatmul.mubr.f32.gmra.mxu0 %v1191
          %v1193 = vpop.f32.mrf.mxu0
          %v1194 = vadd.f32 %v1059, %v1193
          %v1195 = vpop.f32.mrf.mxu0
          %1196 = vmatprep.mubr.f32.mxu0 0.0
          %v1197 = vand.u32 %v628, 4294901760
          %v1198 = vsub.f32 %v628, %v1197
          %v1199 = vand.u32 %v1198, 4294901760
          %1200 = vmatmul.mubr.f32.gmra.mxu0 %v1199
          %v1201 = vpop.f32.mrf.mxu0
          %v1202 = vadd.f32 %v1066, %v1201
          %v1203 = vpop.f32.mrf.mxu0
          %1204 = vmatprep.mubr.f32.mxu0 0.0
          %v1205 = vand.u32 %v631, 4294901760
          %v1206 = vsub.f32 %v631, %v1205
          %v1207 = vand.u32 %v1206, 4294901760
          %1208 = vmatmul.mubr.f32.gmra.mxu0 %v1207
          %v1209 = vpop.f32.mrf.mxu0
          %v1210 = vadd.f32 %v1073, %v1209
          %v1211 = vpop.f32.mrf.mxu0
          %1212 = vdwg.mxu0
          %1213 = vmatprep.subr.mxu0 0.0
          %1214 = vmatpush1.msra.mxu0 0.0
          %1215 = vmatprep.subr.mxu0 0.0
          %1216 = vmatpush1.msra.mxu0 0.0
          %1217 = vmatprep.subr.mxu0 0.0
          %1218 = vmatpush1.msra.mxu0 0.0
          %1219 = vmatprep.subr.mxu0 0.0
          %1220 = vmatpush1.msra.mxu0 0.0
          %1221 = vmatprep.subr.mxu0 0.0
          %1222 = vmatpush1.msra.mxu0 0.0
          %1223 = vmatprep.subr.mxu0 0.0
          %1224 = vmatpush1.msra.mxu0 0.0
          %1225 = vmatprep.subr.mxu0 0.0
          %1226 = vmatpush1.msra.mxu0 0.0
          %1227 = vmatprep.subr.mxu0 0.0
          %1228 = vmatpush1.msra.mxu0 0.0
          %1229 = vmatprep.subr.mxu0 0.0
          %v1230 = vand.u32 %v607, 4294901760
          %v1231 = vsub.f32 %v607, %v1230
          %v1232 = vand.u32 %v1231, 4294901760
          %1233 = vmatpush1.msra.mxu0 %v1232
          %1234 = vmatprep.subr.mxu0 0.0
          %v1235 = vand.u32 %v606, 4294901760
          %v1236 = vsub.f32 %v606, %v1235
          %v1237 = vand.u32 %v1236, 4294901760
          %1238 = vmatpush1.msra.mxu0 %v1237
          %1239 = vmatprep.subr.mxu0 0.0
          %v1240 = vand.u32 %v605, 4294901760
          %v1241 = vsub.f32 %v605, %v1240
          %v1242 = vand.u32 %v1241, 4294901760
          %1243 = vmatpush1.msra.mxu0 %v1242
          %1244 = vmatprep.subr.mxu0 0.0
          %v1245 = vand.u32 %v604, 4294901760
          %v1246 = vsub.f32 %v604, %v1245
          %v1247 = vand.u32 %v1246, 4294901760
          %1248 = vmatpush1.msra.mxu0 %v1247
          %1249 = vmatprep.subr.mxu0 0.0
          %v1250 = vand.u32 %v603, 4294901760
          %v1251 = vsub.f32 %v603, %v1250
          %v1252 = vand.u32 %v1251, 4294901760
          %1253 = vmatpush1.msra.mxu0 %v1252
          %1254 = vmatprep.subr.mxu0 0.0
          %v1255 = vand.u32 %v602, 4294901760
          %v1256 = vsub.f32 %v602, %v1255
          %v1257 = vand.u32 %v1256, 4294901760
          %1258 = vmatpush1.msra.mxu0 %v1257
          %1259 = vmatprep.subr.mxu0 0.0
          %v1260 = vand.u32 %v601, 4294901760
          %v1261 = vsub.f32 %v601, %v1260
          %v1262 = vand.u32 %v1261, 4294901760
          %1263 = vmatpush1.msra.mxu0 %v1262
          %1264 = vmatprep.subr.mxu0 0.0
          %v1265 = vand.u32 %v600, 4294901760
          %v1266 = vsub.f32 %v600, %v1265
          %v1267 = vand.u32 %v1266, 4294901760
          %1268 = vmatpush1.msra.mxu0 %v1267
          %1269 = vmatprep.subr.mxu0 0.0
          %1270 = vmatpush2.msra.mxu0 0.0
          %1271 = vmatprep.subr.mxu0 0.0
          %1272 = vmatpush2.msra.mxu0 0.0
          %1273 = vmatprep.subr.mxu0 0.0
          %1274 = vmatpush2.msra.mxu0 0.0
          %1275 = vmatprep.subr.mxu0 0.0
          %1276 = vmatpush2.msra.mxu0 0.0
          %1277 = vmatprep.subr.mxu0 0.0
          %1278 = vmatpush2.msra.mxu0 0.0
          %1279 = vmatprep.subr.mxu0 0.0
          %1280 = vmatpush2.msra.mxu0 0.0
          %1281 = vmatprep.subr.mxu0 0.0
          %1282 = vmatpush2.msra.mxu0 0.0
          %1283 = vmatprep.subr.mxu0 0.0
          %1284 = vmatpush2.msra.mxu0 0.0
          %1285 = vmatprep.subr.mxu0 0.0
          %1286 = vmatpush2.msra.mxu0 0.0
          %1287 = vmatprep.subr.mxu0 0.0
          %1288 = vmatpush2.msra.mxu0 0.0
          %1289 = vmatprep.subr.mxu0 0.0
          %1290 = vmatpush2.msra.mxu0 0.0
          %1291 = vmatprep.subr.mxu0 0.0
          %1292 = vmatpush2.msra.mxu0 0.0
          %1293 = vmatprep.subr.mxu0 0.0
          %1294 = vmatpush2.msra.mxu0 0.0
          %1295 = vmatprep.subr.mxu0 0.0
          %1296 = vmatpush2.msra.mxu0 0.0
          %1297 = vmatprep.subr.mxu0 0.0
          %1298 = vmatpush2.msra.mxu0 0.0
          %1299 = vmatprep.subr.mxu0 0.0
          %1300 = vmatpush2.msra.mxu0 0.0
          %1301 = vmatprep.mubr.f32.mxu0 0.0
          %v1302 = vand.u32 %v610, 4294901760
          %1303 = vmatmul.mubr.f32.gmra.mxu0 %v1302
          %v1304 = vpop.f32.mrf.mxu0
          %v1305 = vadd.f32 %v1154, %v1304
          %v1306 = vpop.f32.mrf.mxu0
          %1307 = vmatprep.mubr.f32.mxu0 0.0
          %v1308 = vand.u32 %v613, 4294901760
          %1309 = vmatmul.mubr.f32.gmra.mxu0 %v1308
          %v1310 = vpop.f32.mrf.mxu0
          %v1311 = vadd.f32 %v1162, %v1310
          %v1312 = vpop.f32.mrf.mxu0
          %1313 = vmatprep.mubr.f32.mxu0 0.0
          %v1314 = vand.u32 %v616, 4294901760
          %1315 = vmatmul.mubr.f32.gmra.mxu0 %v1314
          %v1316 = vpop.f32.mrf.mxu0
          %v1317 = vadd.f32 %v1170, %v1316
          %v1318 = vpop.f32.mrf.mxu0
          %1319 = vmatprep.mubr.f32.mxu0 0.0
          %v1320 = vand.u32 %v619, 4294901760
          %1321 = vmatmul.mubr.f32.gmra.mxu0 %v1320
          %v1322 = vpop.f32.mrf.mxu0
          %v1323 = vadd.f32 %v1178, %v1322
          %v1324 = vpop.f32.mrf.mxu0
          %1325 = vmatprep.mubr.f32.mxu0 0.0
          %v1326 = vand.u32 %v622, 4294901760
          %1327 = vmatmul.mubr.f32.gmra.mxu0 %v1326
          %v1328 = vpop.f32.mrf.mxu0
          %v1329 = vadd.f32 %v1186, %v1328
          %v1330 = vpop.f32.mrf.mxu0
          %1331 = vmatprep.mubr.f32.mxu0 0.0
          %v1332 = vand.u32 %v625, 4294901760
          %1333 = vmatmul.mubr.f32.gmra.mxu0 %v1332
          %v1334 = vpop.f32.mrf.mxu0
          %v1335 = vadd.f32 %v1194, %v1334
          %v1336 = vpop.f32.mrf.mxu0
          %1337 = vmatprep.mubr.f32.mxu0 0.0
          %v1338 = vand.u32 %v628, 4294901760
          %1339 = vmatmul.mubr.f32.gmra.mxu0 %v1338
          %v1340 = vpop.f32.mrf.mxu0
          %v1341 = vadd.f32 %v1202, %v1340
          %v1342 = vpop.f32.mrf.mxu0
          %1343 = vmatprep.mubr.f32.mxu0 0.0
          %v1344 = vand.u32 %v631, 4294901760
          %1345 = vmatmul.mubr.f32.gmra.mxu0 %v1344
          %v1346 = vpop.f32.mrf.mxu0
          %v1347 = vadd.f32 %v1210, %v1346
          %v1348 = vpop.f32.mrf.mxu0
          %1349 = vdwg.mxu0
          %1350 = vmatprep.subr.mxu0 0.0
          %1351 = vmatpush1.msra.mxu0 0.0
          %1352 = vmatprep.subr.mxu0 0.0
          %1353 = vmatpush1.msra.mxu0 0.0
          %1354 = vmatprep.subr.mxu0 0.0
          %1355 = vmatpush1.msra.mxu0 0.0
          %1356 = vmatprep.subr.mxu0 0.0
          %1357 = vmatpush1.msra.mxu0 0.0
          %1358 = vmatprep.subr.mxu0 0.0
          %1359 = vmatpush1.msra.mxu0 0.0
          %1360 = vmatprep.subr.mxu0 0.0
          %1361 = vmatpush1.msra.mxu0 0.0
          %1362 = vmatprep.subr.mxu0 0.0
          %1363 = vmatpush1.msra.mxu0 0.0
          %1364 = vmatprep.subr.mxu0 0.0
          %1365 = vmatpush1.msra.mxu0 0.0
          %1366 = vmatprep.subr.mxu0 0.0
          %v1367 = vand.u32 %v607, 4294901760
          %1368 = vmatpush1.msra.mxu0 %v1367
          %1369 = vmatprep.subr.mxu0 0.0
          %v1370 = vand.u32 %v606, 4294901760
          %1371 = vmatpush1.msra.mxu0 %v1370
          %1372 = vmatprep.subr.mxu0 0.0
          %v1373 = vand.u32 %v605, 4294901760
          %1374 = vmatpush1.msra.mxu0 %v1373
          %1375 = vmatprep.subr.mxu0 0.0
          %v1376 = vand.u32 %v604, 4294901760
          %1377 = vmatpush1.msra.mxu0 %v1376
          %1378 = vmatprep.subr.mxu0 0.0
          %v1379 = vand.u32 %v603, 4294901760
          %1380 = vmatpush1.msra.mxu0 %v1379
          %1381 = vmatprep.subr.mxu0 0.0
          %v1382 = vand.u32 %v602, 4294901760
          %1383 = vmatpush1.msra.mxu0 %v1382
          %1384 = vmatprep.subr.mxu0 0.0
          %v1385 = vand.u32 %v601, 4294901760
          %1386 = vmatpush1.msra.mxu0 %v1385
          %1387 = vmatprep.subr.mxu0 0.0
          %v1388 = vand.u32 %v600, 4294901760
          %1389 = vmatpush1.msra.mxu0 %v1388
          %1390 = vmatprep.subr.mxu0 0.0
          %1391 = vmatpush2.msra.mxu0 0.0
          %1392 = vmatprep.subr.mxu0 0.0
          %1393 = vmatpush2.msra.mxu0 0.0
          %1394 = vmatprep.subr.mxu0 0.0
          %1395 = vmatpush2.msra.mxu0 0.0
          %1396 = vmatprep.subr.mxu0 0.0
          %1397 = vmatpush2.msra.mxu0 0.0
          %1398 = vmatprep.subr.mxu0 0.0
          %1399 = vmatpush2.msra.mxu0 0.0
          %1400 = vmatprep.subr.mxu0 0.0
          %1401 = vmatpush2.msra.mxu0 0.0
          %1402 = vmatprep.subr.mxu0 0.0
          %1403 = vmatpush2.msra.mxu0 0.0
          %1404 = vmatprep.subr.mxu0 0.0
          %1405 = vmatpush2.msra.mxu0 0.0
          %1406 = vmatprep.subr.mxu0 0.0
          %1407 = vmatpush2.msra.mxu0 0.0
          %1408 = vmatprep.subr.mxu0 0.0
          %1409 = vmatpush2.msra.mxu0 0.0
          %1410 = vmatprep.subr.mxu0 0.0
          %1411 = vmatpush2.msra.mxu0 0.0
          %1412 = vmatprep.subr.mxu0 0.0
          %1413 = vmatpush2.msra.mxu0 0.0
          %1414 = vmatprep.subr.mxu0 0.0
          %1415 = vmatpush2.msra.mxu0 0.0
          %1416 = vmatprep.subr.mxu0 0.0
          %1417 = vmatpush2.msra.mxu0 0.0
          %1418 = vmatprep.subr.mxu0 0.0
          %1419 = vmatpush2.msra.mxu0 0.0
          %1420 = vmatprep.subr.mxu0 0.0
          %1421 = vmatpush2.msra.mxu0 0.0
          %1422 = vmatprep.mubr.f32.mxu0 0.0
          %v1423 = vand.u32 %v610, 4294901760
          %1424 = vmatmul.mubr.f32.gmra.mxu0 %v1423
          %v1425 = vpop.f32.mrf.mxu0
          %v1426 = vadd.f32 %v1305, %v1425
          %v1427 = vpop.f32.mrf.mxu0
          %1428 = vmatprep.mubr.f32.mxu0 0.0
          %v1429 = vand.u32 %v613, 4294901760
          %1430 = vmatmul.mubr.f32.gmra.mxu0 %v1429
          %v1431 = vpop.f32.mrf.mxu0
          %v1432 = vadd.f32 %v1311, %v1431
          %v1433 = vpop.f32.mrf.mxu0
          %1434 = vmatprep.mubr.f32.mxu0 0.0
          %v1435 = vand.u32 %v616, 4294901760
          %1436 = vmatmul.mubr.f32.gmra.mxu0 %v1435
          %v1437 = vpop.f32.mrf.mxu0
          %v1438 = vadd.f32 %v1317, %v1437
          %v1439 = vpop.f32.mrf.mxu0
          %1440 = vmatprep.mubr.f32.mxu0 0.0
          %v1441 = vand.u32 %v619, 4294901760
          %1442 = vmatmul.mubr.f32.gmra.mxu0 %v1441
          %v1443 = vpop.f32.mrf.mxu0
          %v1444 = vadd.f32 %v1323, %v1443
          %v1445 = vpop.f32.mrf.mxu0
          %1446 = vmatprep.mubr.f32.mxu0 0.0
          %v1447 = vand.u32 %v622, 4294901760
          %1448 = vmatmul.mubr.f32.gmra.mxu0 %v1447
          %v1449 = vpop.f32.mrf.mxu0
          %v1450 = vadd.f32 %v1329, %v1449
          %v1451 = vpop.f32.mrf.mxu0
          %1452 = vmatprep.mubr.f32.mxu0 0.0
          %v1453 = vand.u32 %v625, 4294901760
          %1454 = vmatmul.mubr.f32.gmra.mxu0 %v1453
          %v1455 = vpop.f32.mrf.mxu0
          %v1456 = vadd.f32 %v1335, %v1455
          %v1457 = vpop.f32.mrf.mxu0
          %1458 = vmatprep.mubr.f32.mxu0 0.0
          %v1459 = vand.u32 %v628, 4294901760
          %1460 = vmatmul.mubr.f32.gmra.mxu0 %v1459
          %v1461 = vpop.f32.mrf.mxu0
          %v1462 = vadd.f32 %v1341, %v1461
          %v1463 = vpop.f32.mrf.mxu0
          %1464 = vmatprep.mubr.f32.mxu0 0.0
          %v1465 = vand.u32 %v631, 4294901760
          %1466 = vmatmul.mubr.f32.gmra.mxu0 %v1465
          %v1467 = vpop.f32.mrf.mxu0
          %v1468 = vadd.f32 %v1347, %v1467
          %v1469 = vpop.f32.mrf.mxu0
          %1470 = vdwg.mxu0
          %v1471 = vmul.f32 %v1426, %v1426
          %v1472 = vmul.f32 %v1432, %v1432
          %v1473 = vmul.f32 %v1438, %v1438
          %v1474 = vmul.f32 %v1444, %v1444
          %v1475 = vmul.f32 %v1450, %v1450
          %v1476 = vmul.f32 %v1456, %v1456
          %v1477 = vmul.f32 %v1462, %v1462
          %v1478 = vmul.f32 %v1468, %v1468
          %1487 = vrot.lane.b32.xlu0 %v1471, 1
          %v1488 = vpop.permute.xlu0 %1487
          %1489 = vrot.lane.b32.xlu0 %v1472, 1
          %v1490 = vpop.permute.xlu0 %1489
          %1491 = vrot.lane.b32.xlu0 %v1473, 1
          %v1492 = vpop.permute.xlu0 %1491
          %1493 = vrot.lane.b32.xlu0 %v1474, 1
          %v1494 = vpop.permute.xlu0 %1493
          %1495 = vrot.lane.b32.xlu0 %v1475, 1
          %v1496 = vpop.permute.xlu0 %1495
          %1497 = vrot.lane.b32.xlu0 %v1476, 1
          %v1498 = vpop.permute.xlu0 %1497
          %1499 = vrot.lane.b32.xlu0 %v1477, 1
          %v1500 = vpop.permute.xlu0 %1499
          %1501 = vrot.lane.b32.xlu0 %v1478, 1
          %v1502 = vpop.permute.xlu0 %1501
          %v1511 = vsub.f32 %v1426, %v1488
          %v1512 = vsub.f32 %v1432, %v1490
          %v1513 = vsub.f32 %v1438, %v1492
          %v1514 = vsub.f32 %v1444, %v1494
          %v1515 = vsub.f32 %v1450, %v1496
          %v1516 = vsub.f32 %v1456, %v1498
          %v1517 = vsub.f32 %v1462, %v1500
          %v1518 = vsub.f32 %v1468, %v1502
          %v1519 = vmax.f32 %v1511, 0.0
          %v1520 = vmax.f32 %v1512, 0.0
          %v1521 = vmax.f32 %v1513, 0.0
          %v1522 = vmax.f32 %v1514, 0.0
          %v1523 = vmax.f32 %v1515, 0.0
          %v1524 = vmax.f32 %v1516, 0.0
          %v1525 = vmax.f32 %v1517, 0.0
          %v1526 = vmax.f32 %v1518, 0.0
          %1527 = vst.msk [vmem:[%s486] sm:$0xff] %vm562, %v1426
          %1528 = vst.msk [vmem:[%s486 + $0x8] sm:$0xff] %vm562, %v1432
          %1529 = vst.msk [vmem:[%s486 + $0x10] sm:$0xff] %vm562, %v1438
          %1530 = vst.msk [vmem:[%s486 + $0x18] sm:$0xff] %vm562, %v1444
          %1531 = vst.msk [vmem:[%s486 + $0x20] sm:$0xff] %vm562, %v1450
          %1532 = vst.msk [vmem:[%s486 + $0x28] sm:$0xff] %vm562, %v1456
          %1533 = vst.msk [vmem:[%s486 + $0x30] sm:$0xff] %vm562, %v1462
          %1534 = vst.msk [vmem:[%s486 + $0x38] sm:$0xff] %vm562, %v1468
          %v1535 = vadd.f32 %v1519, 1e-05
          %v1536 = vadd.f32 %v1520, 1e-05
          %v1537 = vadd.f32 %v1521, 1e-05
          %v1538 = vadd.f32 %v1522, 1e-05
          %v1539 = vadd.f32 %v1523, 1e-05
          %v1540 = vadd.f32 %v1524, 1e-05
          %v1541 = vadd.f32 %v1525, 1e-05
          %v1542 = vadd.f32 %v1526, 1e-05
          %v1543 = vrsqrt.pop %v1535
          %v1544 = vrsqrt.pop %v1536
          %v1545 = vrsqrt.pop %v1537
          %v1546 = vrsqrt.pop %v1538
          %v1547 = vrsqrt.pop %v1539
          %v1548 = vrsqrt.pop %v1540
          %v1549 = vrsqrt.pop %v1541
          %v1550 = vrsqrt.pop %v1542
          %1559 = vrot.lane.b32.xlu0 %v1543, 127
          %v1560 = vpop.permute.xlu0 %1559
          %1561 = vrot.lane.b32.xlu0 %v1544, 127
          %v1562 = vpop.permute.xlu0 %1561
          %1563 = vrot.lane.b32.xlu0 %v1545, 127
          %v1564 = vpop.permute.xlu0 %1563
          %1565 = vrot.lane.b32.xlu0 %v1546, 127
          %v1566 = vpop.permute.xlu0 %1565
          %1567 = vrot.lane.b32.xlu0 %v1547, 127
          %v1568 = vpop.permute.xlu0 %1567
          %1569 = vrot.lane.b32.xlu0 %v1548, 127
          %v1570 = vpop.permute.xlu0 %1569
          %1571 = vrot.lane.b32.xlu0 %v1549, 127
          %v1572 = vpop.permute.xlu0 %1571
          %1573 = vrot.lane.b32.xlu0 %v1550, 127
          %v1574 = vpop.permute.xlu0 %1573
          %1583 = vst.msk [vmem:[%s491] sm:$0xff] %vm562, %v1560
          %1584 = vst.msk [vmem:[%s491 + $0x8] sm:$0xff] %vm562, %v1562
          %1585 = vst.msk [vmem:[%s491 + $0x10] sm:$0xff] %vm562, %v1564
          %1586 = vst.msk [vmem:[%s491 + $0x18] sm:$0xff] %vm562, %v1566
          %1587 = vst.msk [vmem:[%s491 + $0x20] sm:$0xff] %vm562, %v1568
          %1588 = vst.msk [vmem:[%s491 + $0x28] sm:$0xff] %vm562, %v1570
          %1589 = vst.msk [vmem:[%s491 + $0x30] sm:$0xff] %vm562, %v1572
          %1590 = vst.msk [vmem:[%s491 + $0x38] sm:$0xff] %vm562, %v1574
          %v1591 = vld [vmem:[%s481] sm:$0xf]
          %v1592 = vld [vmem:[%s481 + $0x4] sm:$0xf]
          %v1593 = vld [vmem:[%s481 + $0x8] sm:$0xf]
          %v1594 = vld [vmem:[%s481 + $0xc] sm:$0xf]
          %v1595 = vld [vmem:[%s481 + $0x10] sm:$0xf]
          %v1596 = vld [vmem:[%s481 + $0x14] sm:$0xf]
          %v1597 = vld [vmem:[%s481 + $0x18] sm:$0xf]
          %v1598 = vld [vmem:[%s481 + $0x1c] sm:$0xf]
          %v1599 = vld [vmem:[%s481 + $0x20] sm:$0xf]
          %v1600 = vld [vmem:[%s481 + $0x24] sm:$0xf]
          %v1601 = vld [vmem:[%s481 + $0x28] sm:$0xf]
          %v1602 = vld [vmem:[%s481 + $0x2c] sm:$0xf]
          %v1603 = vld [vmem:[%s481 + $0x30] sm:$0xf]
          %v1604 = vld [vmem:[%s481 + $0x34] sm:$0xf]
          %v1605 = vld [vmem:[%s481 + $0x38] sm:$0xf]
          %v1606 = vld [vmem:[%s481 + $0x3c] sm:$0xf]
          %v1607 = vld [vmem:[%s3] sm:$0xf]
          %v1608 = vld [vmem:[%s3 + $0x4] sm:$0xf]
          %v1609 = vld [vmem:[%s3 + $0x8] sm:$0xf]
          %v1610 = vld [vmem:[%s3 + $0xc] sm:$0xf]
          %v1611 = vld [vmem:[%s3 + $0x10] sm:$0xf]
          %v1612 = vld [vmem:[%s3 + $0x14] sm:$0xf]
          %v1613 = vld [vmem:[%s3 + $0x18] sm:$0xf]
          %v1614 = vld [vmem:[%s3 + $0x1c] sm:$0xf]
          %v1615 = vld [vmem:[%s4] sm:$0xff]
          %v1616 = vld [vmem:[%s4 + $0x8] sm:$0xff]
          %v1617 = vld [vmem:[%s4 + $0x10] sm:$0xff]
          %v1618 = vld [vmem:[%s4 + $0x18] sm:$0xff]
          %v1619 = vld [vmem:[%s4 + $0x20] sm:$0xff]
          %v1620 = vld [vmem:[%s4 + $0x28] sm:$0xff]
          %v1621 = vld [vmem:[%s4 + $0x30] sm:$0xff]
          %v1622 = vld [vmem:[%s4 + $0x38] sm:$0xff]
          %1624 = vset.pattern.permute.xlu0 0
          %1625 = vperm.xlu0 %1624, %v1615
          %v1626 = vpop.permute.xlu0 %1625
          %1629 = vset.pattern.permute.xlu0 0
          %1630 = vperm.xlu0 %1629, %v1616
          %v1631 = vpop.permute.xlu0 %1630
          %1634 = vset.pattern.permute.xlu0 0
          %1635 = vperm.xlu0 %1634, %v1617
          %v1636 = vpop.permute.xlu0 %1635
          %1639 = vset.pattern.permute.xlu0 0
          %1640 = vperm.xlu0 %1639, %v1618
          %v1641 = vpop.permute.xlu0 %1640
          %1644 = vset.pattern.permute.xlu0 0
          %1645 = vperm.xlu0 %1644, %v1619
          %v1646 = vpop.permute.xlu0 %1645
          %1649 = vset.pattern.permute.xlu0 0
          %1650 = vperm.xlu0 %1649, %v1620
          %v1651 = vpop.permute.xlu0 %1650
          %1654 = vset.pattern.permute.xlu0 0
          %1655 = vperm.xlu0 %1654, %v1621
          %v1656 = vpop.permute.xlu0 %1655
          %1659 = vset.pattern.permute.xlu0 0
          %1660 = vperm.xlu0 %1659, %v1622
          %v1661 = vpop.permute.xlu0 %1660
          %v1671 = vunpack.c.l.b16 %v1607
          %v1672 = vunpack.c.l.b16 %v1608
          %v1673 = vunpack.c.l.b16 %v1609
          %v1674 = vunpack.c.l.b16 %v1610
          %v1675 = vunpack.c.l.b16 %v1611
          %v1676 = vunpack.c.l.b16 %v1612
          %v1677 = vunpack.c.l.b16 %v1613
          %v1678 = vunpack.c.l.b16 %v1614
          %v1679 = vpack.c.b16 %v1672, %v1671
          %v1680 = vpack.c.b16 %v1674, %v1673
          %v1681 = vpack.c.b16 %v1676, %v1675
          %v1682 = vpack.c.b16 %v1678, %v1677
          %v1699 = vunpack.c.l.b16 %v1591
          %v1700 = vunpack.c.l.b16 %v1592
          %v1701 = vunpack.c.l.b16 %v1593
          %v1702 = vunpack.c.l.b16 %v1594
          %v1703 = vunpack.c.l.b16 %v1595
          %v1704 = vunpack.c.l.b16 %v1596
          %v1705 = vunpack.c.l.b16 %v1597
          %v1706 = vunpack.c.l.b16 %v1598
          %v1707 = vunpack.c.l.b16 %v1599
          %v1708 = vunpack.c.l.b16 %v1600
          %v1709 = vunpack.c.l.b16 %v1601
          %v1710 = vunpack.c.l.b16 %v1602
          %v1711 = vunpack.c.l.b16 %v1603
          %v1712 = vunpack.c.l.b16 %v1604
          %v1713 = vunpack.c.l.b16 %v1605
          %v1714 = vunpack.c.l.b16 %v1606
          %v1715 = vpack.c.b16 %v1700, %v1699
          %v1716 = vpack.c.b16 %v1702, %v1701
          %v1717 = vpack.c.b16 %v1704, %v1703
          %v1718 = vpack.c.b16 %v1706, %v1705
          %v1719 = vpack.c.b16 %v1708, %v1707
          %v1720 = vpack.c.b16 %v1710, %v1709
          %v1721 = vpack.c.b16 %v1712, %v1711
          %v1722 = vpack.c.b16 %v1714, %v1713
          %vm1723 = vcmask 261120
          %v1725 = vsel %vm1723, %v1679, 0
          %v1728 = vsel %vm1723, %v1680, 0
          %v1731 = vsel %vm1723, %v1681, 0
          %v1734 = vsel %vm1723, %v1682, 0
          %v1737 = vsel %vm1723, %v1715, 0
          %v1740 = vsel %vm1723, %v1716, 0
          %v1743 = vsel %vm1723, %v1717, 0
          %v1746 = vsel %vm1723, %v1718, 0
          %v1749 = vsel %vm1723, %v1719, 0
          %v1752 = vsel %vm1723, %v1720, 0
          %v1755 = vsel %vm1723, %v1721, 0
          %v1758 = vsel %vm1723, %v1722, 0
          %1760 = vmatprep.subr.bf16.mxu0 0
          %1761 = vmatpush1.bf16.xpose.msra.mxu0 %v1758
          %1762 = vmatprep.subr.bf16.mxu0 0
          %1763 = vmatpush1.bf16.xpose.msra.mxu0 %v1755
          %1764 = vmatprep.subr.bf16.mxu0 0
          %1765 = vmatpush1.bf16.xpose.msra.mxu0 %v1752
          %1766 = vmatprep.subr.bf16.mxu0 0
          %1767 = vmatpush1.bf16.xpose.msra.mxu0 %v1749
          %1768 = vmatprep.subr.bf16.mxu0 0
          %1769 = vmatpush1.bf16.xpose.msra.mxu0 %v1746
          %1770 = vmatprep.subr.bf16.mxu0 0
          %1771 = vmatpush1.bf16.xpose.msra.mxu0 %v1743
          %1772 = vmatprep.subr.bf16.mxu0 0
          %1773 = vmatpush1.bf16.xpose.msra.mxu0 %v1740
          %1774 = vmatprep.subr.bf16.mxu0 0
          %1775 = vmatpush1.bf16.xpose.msra.mxu0 %v1737
          %1776 = vmatprep.subr.bf16.mxu0 0
          %1777 = vmatpush2.bf16.xpose.msra.mxu0 0
          %1778 = vmatprep.subr.bf16.mxu0 0
          %1779 = vmatpush2.bf16.xpose.msra.mxu0 0
          %1780 = vmatprep.subr.bf16.mxu0 0
          %1781 = vmatpush2.bf16.xpose.msra.mxu0 0
          %1782 = vmatprep.subr.bf16.mxu0 0
          %1783 = vmatpush2.bf16.xpose.msra.mxu0 0
          %1784 = vmatprep.subr.bf16.mxu0 0
          %1785 = vmatpush2.bf16.xpose.msra.mxu0 0
          %1786 = vmatprep.subr.bf16.mxu0 0
          %1787 = vmatpush2.bf16.xpose.msra.mxu0 0
          %1788 = vmatprep.subr.bf16.mxu0 0
          %1789 = vmatpush2.bf16.xpose.msra.mxu0 0
          %1790 = vmatprep.subr.bf16.mxu0 0
          %1791 = vmatpush2.bf16.xpose.msra.mxu0 0
          %1792 = vmatprep.mubr.bf16.mxu0 0
          %1793 = vmatmul.mubr.bf16.gmra.mxu0 %v1725
          %v1794 = vpop.f32.mrf.mxu0
          %v1795 = vadd.f32 %v1626, %v1794
          %v1796 = vpop.f32.mrf.mxu0
          %v1797 = vpop.f32.mrf.mxu0
          %v1798 = vadd.f32 %v1631, %v1797
          %v1799 = vpop.f32.mrf.mxu0
          %1800 = vmatprep.mubr.bf16.mxu0 0
          %1801 = vmatmul.mubr.bf16.gmra.mxu0 %v1728
          %v1802 = vpop.f32.mrf.mxu0
          %v1803 = vadd.f32 %v1636, %v1802
          %v1804 = vpop.f32.mrf.mxu0
          %v1805 = vpop.f32.mrf.mxu0
          %v1806 = vadd.f32 %v1641, %v1805
          %v1807 = vpop.f32.mrf.mxu0
          %1808 = vmatprep.mubr.bf16.mxu0 0
          %1809 = vmatmul.mubr.bf16.gmra.mxu0 %v1731
          %v1810 = vpop.f32.mrf.mxu0
          %v1811 = vadd.f32 %v1646, %v1810
          %v1812 = vpop.f32.mrf.mxu0
          %v1813 = vpop.f32.mrf.mxu0
          %v1814 = vadd.f32 %v1651, %v1813
          %v1815 = vpop.f32.mrf.mxu0
          %1816 = vmatprep.mubr.bf16.mxu0 0
          %1817 = vmatmul.mubr.bf16.gmra.mxu0 %v1734
          %v1818 = vpop.f32.mrf.mxu0
          %v1819 = vadd.f32 %v1656, %v1818
          %v1820 = vpop.f32.mrf.mxu0
          %v1821 = vpop.f32.mrf.mxu0
          %v1822 = vadd.f32 %v1661, %v1821
          %v1823 = vpop.f32.mrf.mxu0
          %1824 = vdwg.mxu0
          %v1825 = vld [vmem:[%s5] sm:$0xf]
          %v1826 = vld [vmem:[%s5 + $0x4] sm:$0xf]
          %v1827 = vld [vmem:[%s5 + $0x8] sm:$0xf]
          %v1828 = vld [vmem:[%s5 + $0xc] sm:$0xf]
          %v1829 = vld [vmem:[%s5 + $0x10] sm:$0xf]
          %v1830 = vld [vmem:[%s5 + $0x14] sm:$0xf]
          %v1831 = vld [vmem:[%s5 + $0x18] sm:$0xf]
          %v1832 = vld [vmem:[%s5 + $0x1c] sm:$0xf]
          %v1833 = vld [vmem:[%s6] sm:$0xff]
          %v1834 = vld [vmem:[%s6 + $0x8] sm:$0xff]
          %v1835 = vld [vmem:[%s6 + $0x10] sm:$0xff]
          %v1836 = vld [vmem:[%s6 + $0x18] sm:$0xff]
          %v1837 = vld [vmem:[%s6 + $0x20] sm:$0xff]
          %v1838 = vld [vmem:[%s6 + $0x28] sm:$0xff]
          %v1839 = vld [vmem:[%s6 + $0x30] sm:$0xff]
          %v1840 = vld [vmem:[%s6 + $0x38] sm:$0xff]
          %1842 = vset.pattern.permute.xlu0 0
          %1843 = vperm.xlu0 %1842, %v1833
          %v1844 = vpop.permute.xlu0 %1843
          %1847 = vset.pattern.permute.xlu0 0
          %1848 = vperm.xlu0 %1847, %v1834
          %v1849 = vpop.permute.xlu0 %1848
          %1852 = vset.pattern.permute.xlu0 0
          %1853 = vperm.xlu0 %1852, %v1835
          %v1854 = vpop.permute.xlu0 %1853
          %1857 = vset.pattern.permute.xlu0 0
          %1858 = vperm.xlu0 %1857, %v1836
          %v1859 = vpop.permute.xlu0 %1858
          %1862 = vset.pattern.permute.xlu0 0
          %1863 = vperm.xlu0 %1862, %v1837
          %v1864 = vpop.permute.xlu0 %1863
          %1867 = vset.pattern.permute.xlu0 0
          %1868 = vperm.xlu0 %1867, %v1838
          %v1869 = vpop.permute.xlu0 %1868
          %1872 = vset.pattern.permute.xlu0 0
          %1873 = vperm.xlu0 %1872, %v1839
          %v1874 = vpop.permute.xlu0 %1873
          %1877 = vset.pattern.permute.xlu0 0
          %1878 = vperm.xlu0 %1877, %v1840
          %v1879 = vpop.permute.xlu0 %1878
          %v1889 = vunpack.c.l.b16 %v1825
          %v1890 = vunpack.c.l.b16 %v1826
          %v1891 = vunpack.c.l.b16 %v1827
          %v1892 = vunpack.c.l.b16 %v1828
          %v1893 = vunpack.c.l.b16 %v1829
          %v1894 = vunpack.c.l.b16 %v1830
          %v1895 = vunpack.c.l.b16 %v1831
          %v1896 = vunpack.c.l.b16 %v1832
          %v1897 = vpack.c.b16 %v1890, %v1889
          %v1898 = vpack.c.b16 %v1892, %v1891
          %v1899 = vpack.c.b16 %v1894, %v1893
          %v1900 = vpack.c.b16 %v1896, %v1895
          %v1902 = vsel %vm1723, %v1897, 0
          %v1905 = vsel %vm1723, %v1898, 0
          %v1908 = vsel %vm1723, %v1899, 0
          %v1911 = vsel %vm1723, %v1900, 0
          %1913 = vmatprep.subr.bf16.mxu0 0
          %1914 = vmatpush1.bf16.xpose.msra.mxu0 %v1758
          %1915 = vmatprep.subr.bf16.mxu0 0
          %1916 = vmatpush1.bf16.xpose.msra.mxu0 %v1755
          %1917 = vmatprep.subr.bf16.mxu0 0
          %1918 = vmatpush1.bf16.xpose.msra.mxu0 %v1752
          %1919 = vmatprep.subr.bf16.mxu0 0
          %1920 = vmatpush1.bf16.xpose.msra.mxu0 %v1749
          %1921 = vmatprep.subr.bf16.mxu0 0
          %1922 = vmatpush1.bf16.xpose.msra.mxu0 %v1746
          %1923 = vmatprep.subr.bf16.mxu0 0
          %1924 = vmatpush1.bf16.xpose.msra.mxu0 %v1743
          %1925 = vmatprep.subr.bf16.mxu0 0
          %1926 = vmatpush1.bf16.xpose.msra.mxu0 %v1740
          %1927 = vmatprep.subr.bf16.mxu0 0
          %1928 = vmatpush1.bf16.xpose.msra.mxu0 %v1737
          %1929 = vmatprep.subr.bf16.mxu0 0
          %1930 = vmatpush2.bf16.xpose.msra.mxu0 0
          %1931 = vmatprep.subr.bf16.mxu0 0
          %1932 = vmatpush2.bf16.xpose.msra.mxu0 0
          %1933 = vmatprep.subr.bf16.mxu0 0
          %1934 = vmatpush2.bf16.xpose.msra.mxu0 0
          %1935 = vmatprep.subr.bf16.mxu0 0
          %1936 = vmatpush2.bf16.xpose.msra.mxu0 0
          %1937 = vmatprep.subr.bf16.mxu0 0
          %1938 = vmatpush2.bf16.xpose.msra.mxu0 0
          %1939 = vmatprep.subr.bf16.mxu0 0
          %1940 = vmatpush2.bf16.xpose.msra.mxu0 0
          %1941 = vmatprep.subr.bf16.mxu0 0
          %1942 = vmatpush2.bf16.xpose.msra.mxu0 0
          %1943 = vmatprep.subr.bf16.mxu0 0
          %1944 = vmatpush2.bf16.xpose.msra.mxu0 0
          %1945 = vmatprep.mubr.bf16.mxu0 0
          %1946 = vmatmul.mubr.bf16.gmra.mxu0 %v1902
          %v1947 = vpop.f32.mrf.mxu0
          %v1948 = vadd.f32 %v1844, %v1947
          %v1949 = vpop.f32.mrf.mxu0
          %v1950 = vpop.f32.mrf.mxu0
          %v1951 = vadd.f32 %v1849, %v1950
          %v1952 = vpop.f32.mrf.mxu0
          %1953 = vmatprep.mubr.bf16.mxu0 0
          %1954 = vmatmul.mubr.bf16.gmra.mxu0 %v1905
          %v1955 = vpop.f32.mrf.mxu0
          %v1956 = vadd.f32 %v1854, %v1955
          %v1957 = vpop.f32.mrf.mxu0
          %v1958 = vpop.f32.mrf.mxu0
          %v1959 = vadd.f32 %v1859, %v1958
          %v1960 = vpop.f32.mrf.mxu0
          %1961 = vmatprep.mubr.bf16.mxu0 0
          %1962 = vmatmul.mubr.bf16.gmra.mxu0 %v1908
          %v1963 = vpop.f32.mrf.mxu0
          %v1964 = vadd.f32 %v1864, %v1963
          %v1965 = vpop.f32.mrf.mxu0
          %v1966 = vpop.f32.mrf.mxu0
          %v1967 = vadd.f32 %v1869, %v1966
          %v1968 = vpop.f32.mrf.mxu0
          %1969 = vmatprep.mubr.bf16.mxu0 0
          %1970 = vmatmul.mubr.bf16.gmra.mxu0 %v1911
          %v1971 = vpop.f32.mrf.mxu0
          %v1972 = vadd.f32 %v1874, %v1971
          %v1973 = vpop.f32.mrf.mxu0
          %v1974 = vpop.f32.mrf.mxu0
          %v1975 = vadd.f32 %v1879, %v1974
          %v1976 = vpop.f32.mrf.mxu0
          %1977 = vdwg.mxu0
          %v1978 = vpack.c.bf16 %v1798, %v1795
          %v1979 = vpack.c.bf16 %v1806, %v1803
          %v1980 = vpack.c.bf16 %v1814, %v1811
          %v1981 = vpack.c.bf16 %v1822, %v1819
          %v1986 = vunpack.c.l.b16 %v1978
          %v1987 = vunpack.c.h.b16 %v1978
          %v1988 = vunpack.c.l.b16 %v1979
          %v1989 = vunpack.c.h.b16 %v1979
          %v1990 = vunpack.c.l.b16 %v1980
          %v1991 = vunpack.c.h.b16 %v1980
          %v1992 = vunpack.c.l.b16 %v1981
          %v1993 = vunpack.c.h.b16 %v1981
          %v1994 = vpack.c.b16 %v1986, %v1986
          %v1995 = vpack.c.b16 %v1987, %v1987
          %v1996 = vpack.c.b16 %v1988, %v1988
          %v1997 = vpack.c.b16 %v1989, %v1989
          %v1998 = vpack.c.b16 %v1990, %v1990
          %v1999 = vpack.c.b16 %v1991, %v1991
          %v2000 = vpack.c.b16 %v1992, %v1992
          %v2001 = vpack.c.b16 %v1993, %v1993
          %2010 = vst [vmem:[%s469] sm:$0xf] %v1994
          %2011 = vst [vmem:[%s469 + $0x4] sm:$0xf] %v1995
          %2012 = vst [vmem:[%s469 + $0x8] sm:$0xf] %v1996
          %2013 = vst [vmem:[%s469 + $0xc] sm:$0xf] %v1997
          %2014 = vst [vmem:[%s469 + $0x10] sm:$0xf] %v1998
          %2015 = vst [vmem:[%s469 + $0x14] sm:$0xf] %v1999
          %2016 = vst [vmem:[%s469 + $0x18] sm:$0xf] %v2000
          %2017 = vst [vmem:[%s469 + $0x1c] sm:$0xf] %v2001
          %v2018 = vpack.c.bf16 %v1951, %v1948
          %v2019 = vpack.c.bf16 %v1959, %v1956
          %v2020 = vpack.c.bf16 %v1967, %v1964
          %v2021 = vpack.c.bf16 %v1975, %v1972
          %v2026 = vunpack.c.l.b16 %v2018
          %v2027 = vunpack.c.h.b16 %v2018
          %v2028 = vunpack.c.l.b16 %v2019
          %v2029 = vunpack.c.h.b16 %v2019
          %v2030 = vunpack.c.l.b16 %v2020
          %v2031 = vunpack.c.h.b16 %v2020
          %v2032 = vunpack.c.l.b16 %v2021
          %v2033 = vunpack.c.h.b16 %v2021
          %v2034 = vpack.c.b16 %v2026, %v2026
          %v2035 = vpack.c.b16 %v2027, %v2027
          %v2036 = vpack.c.b16 %v2028, %v2028
          %v2037 = vpack.c.b16 %v2029, %v2029
          %v2038 = vpack.c.b16 %v2030, %v2030
          %v2039 = vpack.c.b16 %v2031, %v2031
          %v2040 = vpack.c.b16 %v2032, %v2032
          %v2041 = vpack.c.b16 %v2033, %v2033
          %2050 = vst [vmem:[%s476] sm:$0xf] %v2034
          %2051 = vst [vmem:[%s476 + $0x4] sm:$0xf] %v2035
          %2052 = vst [vmem:[%s476 + $0x8] sm:$0xf] %v2036
          %2053 = vst [vmem:[%s476 + $0xc] sm:$0xf] %v2037
          %2054 = vst [vmem:[%s476 + $0x10] sm:$0xf] %v2038
          %2055 = vst [vmem:[%s476 + $0x14] sm:$0xf] %v2039
          %2056 = vst [vmem:[%s476 + $0x18] sm:$0xf] %v2040
          %2057 = vst [vmem:[%s476 + $0x1c] sm:$0xf] %v2041
        $region94: #{tpu_custom_call.1} parent=81 // pred_fallthru
          _
        %p2058 = scmp.lt.s32.totalorder %s32, 1
        %s2059 = scalar_select %p2058, %s32, 1
        %s2060 = smul.addr %s2059, 8
        %s2061 = smul.addr %s2060, 8
        %s2062 = scalar_lea.vmem %s7, %s2061
        %p2063 = scmp.lt.s32.totalorder %s32, 1
        %s2064 = scalar_select %p2063, %s32, 1
        %s2065 = smul.addr %s2064, 8
        %s2066 = smul.addr %s2065, 8
        %s2067 = scalar_lea.vmem %s8, %s2066
        %s2068 = sand.u32 %s259, 1
        %s2069 = scalar_lea.sflag [#allocation5], %s2068
        %s2070 = sand.u32 %s259, 1
        %s2071 = smul.addr %s2070, 32
        %s2072 = scalar_lea.vmem [#allocation4], %s2071
        %s2073 = sand.u32 %s285, 1
        %s2074 = scalar_lea.sflag [#allocation7], %s2073
        %s2075 = sand.u32 %s285, 1
        %s2076 = smul.addr %s2075, 32
        %s2077 = scalar_lea.vmem [#allocation6], %s2076
        // Predicated region
        $region95: #{tpu_custom_call.1} parent=81 // pred_check
          %p2078 = pneg %p217
        $region96: #{tpu_custom_call.1} parent=81 // pred_check_branch
          %2080 = sbr.rel (%p2078) target = $region98
        $region97: #{tpu_custom_call.1} parent=81 // pred_region
          _
        $region98: #{tpu_custom_call.1} parent=81 // pred_fallthru
          _
        // Predicated region
        $region99: #{tpu_custom_call.1} parent=81 // pred_check
          %p2081 = pneg %p243
        $region100: #{tpu_custom_call.1} parent=81 // pred_check_branch
          %2083 = sbr.rel (%p2081) target = $region102
        $region101: #{tpu_custom_call.1} parent=81 // pred_region
          _
        $region102: #{tpu_custom_call.1} parent=81 // pred_fallthru
          _
        // Predicated region
        $region103: #{tpu_custom_call.1} parent=81 // pred_check
          %p2084 = pneg %p269
        $region104: #{tpu_custom_call.1} parent=81 // pred_check_branch
          %2086 = sbr.rel (%p2084) target = $region106
        $region105: #{tpu_custom_call.1} parent=81 // pred_region
          %s2088 = ssub.s32 512, 512
          %2089 = vsyncadd %s2069, %s2088
          %s2090 = smul.addr %s32, 8
          %s2091 = smul.addr %s2090, 64
          %s2092 = scalar_lea.hbm %s9, %s2091
          %s2093 = sshll.u32 %s2072, 4
          %s2094 = int_to_ptr.vmem [resolvable:$true] %s2093
          %2099 = dma.vmem_to_hbm [thread:$0]  %s2094, 512, %s2092, %s2069, 64, 64, 4
        $region106: #{tpu_custom_call.1} parent=81 // pred_fallthru
          _
        // Predicated region
        $region107: #{tpu_custom_call.1} parent=81 // pred_check
          %p2100 = pneg %p295
        $region108: #{tpu_custom_call.1} parent=81 // pred_check_branch
          %2102 = sbr.rel (%p2100) target = $region110
        $region109: #{tpu_custom_call.1} parent=81 // pred_region
          %s2104 = ssub.s32 512, 512
          %2105 = vsyncadd %s2074, %s2104
          %s2106 = smul.addr %s32, 8
          %s2107 = smul.addr %s2106, 64
          %s2108 = scalar_lea.hbm %s10, %s2107
          %s2109 = sshll.u32 %s2077, 4
          %s2110 = int_to_ptr.vmem [resolvable:$true] %s2109
          %2115 = dma.vmem_to_hbm [thread:$0]  %s2110, 512, %s2108, %s2074, 64, 64, 4
        $region110: #{tpu_custom_call.1} parent=81 // pred_fallthru
          _
      $region82: #{tpu_custom_call.1} parent=5 // pred_fallthru
        _
      %p2116 = scmp.le.s32.totalorder 2, %s23
      // Predicated region
      $region111: #{tpu_custom_call.1} parent=5 // pred_check
        %p2117 = pneg %p2116
      $region112: #{tpu_custom_call.1} parent=5 // pred_check_branch
        %2119 = sbr.rel (%p2117) target = $region114
      $region113: #{tpu_custom_call.1} parent=5 // pred_region
        %s2120 = ssub.s32 %s23, 2
        // Predicated region
        $region115: #{tpu_custom_call.1} parent=113 // pred_check
          %p2121 = pneg %p223
        $region116: #{tpu_custom_call.1} parent=113 // pred_check_branch
          %2123 = sbr.rel (%p2121) target = $region118
        $region117: #{tpu_custom_call.1} parent=113 // pred_region
          %p2124 = scmp.lt.s32.totalorder %s34, 1
          %s2125 = scalar_select %p2124, %s34, 1
          %s2126 = smul.addr %s2125, 8
          %s2127 = smul.addr %s2126, 8
          %s2128 = scalar_lea.vmem %s7, %s2127
        $region118: #{tpu_custom_call.1} parent=113 // pred_fallthru
          _
        // Predicated region
        $region119: #{tpu_custom_call.1} parent=113 // pred_check
          %p2129 = pneg %p249
        $region120: #{tpu_custom_call.1} parent=113 // pred_check_branch
          %2131 = sbr.rel (%p2129) target = $region122
        $region121: #{tpu_custom_call.1} parent=113 // pred_region
          %p2132 = scmp.lt.s32.totalorder %s34, 1
          %s2133 = scalar_select %p2132, %s34, 1
          %s2134 = smul.addr %s2133, 8
          %s2135 = smul.addr %s2134, 8
          %s2136 = scalar_lea.vmem %s8, %s2135
        $region122: #{tpu_custom_call.1} parent=113 // pred_fallthru
          _
        // Predicated region
        $region123: #{tpu_custom_call.1} parent=113 // pred_check
          %p2137 = pneg %p275
        $region124: #{tpu_custom_call.1} parent=113 // pred_check_branch
          %2139 = sbr.rel (%p2137) target = $region126
        $region125: #{tpu_custom_call.1} parent=113 // pred_region
          %s2140 = sand.u32 %s260, 1
          %s2141 = scalar_lea.sflag [#allocation5], %s2140
          %s2142 = sand.u32 %s260, 1
          %s2143 = smul.addr %s2142, 32
          %s2144 = scalar_lea.vmem [#allocation4], %s2143
          %2145 = dma.done %s2141, 512
        $region126: #{tpu_custom_call.1} parent=113 // pred_fallthru
          _
        // Predicated region
        $region127: #{tpu_custom_call.1} parent=113 // pred_check
          %p2146 = pneg %p301
        $region128: #{tpu_custom_call.1} parent=113 // pred_check_branch
          %2148 = sbr.rel (%p2146) target = $region130
        $region129: #{tpu_custom_call.1} parent=113 // pred_region
          %s2149 = sand.u32 %s286, 1
          %s2150 = scalar_lea.sflag [#allocation7], %s2149
          %s2151 = sand.u32 %s286, 1
          %s2152 = smul.addr %s2151, 32
          %s2153 = scalar_lea.vmem [#allocation6], %s2152
          %2154 = dma.done %s2150, 512
        $region130: #{tpu_custom_call.1} parent=113 // pred_fallthru
          _
      $region114: #{tpu_custom_call.1} parent=5 // pred_fallthru
        _
    $region6: #{tpu_custom_call.1} parent=1 // loop_footer
      %s27 = sadd.s32 1, %s23
    $region7: #{tpu_custom_call.1} parent=1 // loop_footer_branch
      %22 = sbr.rel target = $region3
    $region8: #{tpu_custom_call.1} parent=1 // loop_exit
      _
    %2155 = vsyncpa [#allocation5], 1
    %s2156 = scalar_lea.sflag [#allocation5], 1
    %2157 = vsyncpa %s2156, 1
    %2158 = vsyncpa [#allocation7], 1
    %s2159 = scalar_lea.sflag [#allocation7], 1
    %2160 = vsyncpa %s2159, 1

</llo_original>
